<compile_context>
chip_gen: v7x
topology: tpu7x:2x2x1
jax: 0.10.0
libtpu: 0.0.40
codegen_flags: <defaults>
</compile_context>

<pallas_src>
import functools

import jax
import jax.numpy as jnp
from jax import lax
from jax.experimental import pallas as pl
from jax.experimental.pallas import tpu as pltpu


def _bottleneck_kernel(x_ref, w1_ref, w2_ref, w3_ref, b1_ref, b2_ref, b3_ref,
                       out_ref, pad_ref, col_ref, *, H, W, TH, P):
    """One grid step = one (image, row-slab) pair.

    x_ref  : (1, H, W, 4P)  bf16  full input image (resident across the slab axis)
    w1_ref : (4P, P)        bf16  conv1 1x1 weights * bn1 scale
    w2_ref : (9P, P)        bf16  conv2 3x3 weights * bn2 scale, im2col (ky,kx,cin)
    w3_ref : (P, 4P)        bf16  conv3 1x1 weights * bn3 scale
    b*_ref : (1, C)         f32   folded BN biases
    out_ref: (1, TH, W, 4P) bf16  output row slab
    pad_ref: (TH+2, W+2, P) bf16  scratch: zero-padded conv2 input slab (1-px halo)
    col_ref: (TH*W, 9P)     bf16  scratch: im2col patches for the slab
    """
    Cin = 4 * P
    i = pl.program_id(1)
    r0 = i * TH

    w1 = w1_ref[...]
    b1 = b1_ref[...]

    # ---- conv1 (1x1, bn1 scale pre-folded) + bias + relu on the slab rows ----
    xf = x_ref[0, pl.ds(r0, TH), :, :].reshape(TH * W, Cin)                 # bf16
    h1 = jnp.dot(xf, w1, preferred_element_type=jnp.float32)                # (TH*W, P)
    h1 = jnp.maximum(h1 + b1, 0.0)
    pad_ref[1:TH + 1, 1:W + 1, :] = h1.reshape(TH, W, P).astype(jnp.bfloat16)

    # ---- conv1 on the two halo rows, masked to zero at the image border ----
    top_idx = jnp.maximum(r0 - 1, 0)
    x_top = x_ref[0, pl.ds(top_idx, 1), :, :].reshape(W, Cin)
    h_top = jnp.maximum(
        jnp.dot(x_top, w1, preferred_element_type=jnp.float32) + b1, 0.0)
    top_valid = jnp.where(i > 0, 1.0, 0.0)
    pad_ref[0:1, 1:W + 1, :] = (
        (h_top * top_valid).reshape(1, W, P).astype(jnp.bfloat16))

    bot_idx = jnp.minimum(r0 + TH, H - 1)
    x_bot = x_ref[0, pl.ds(bot_idx, 1), :, :].reshape(W, Cin)
    h_bot = jnp.maximum(
        jnp.dot(x_bot, w1, preferred_element_type=jnp.float32) + b1, 0.0)
    bot_valid = jnp.where(i < pl.num_programs(1) - 1, 1.0, 0.0)
    pad_ref[TH + 1:TH + 2, 1:W + 1, :] = (
        (h_bot * bot_valid).reshape(1, W, P).astype(jnp.bfloat16))

    # Left/right 1-pixel halo columns (also covers the 4 corners).  Re-zeroed every
    # step on purpose: the scratch persists across grid steps and cores.
    zcol = jnp.zeros((TH + 2, 1, P), jnp.bfloat16)
    pad_ref[:, 0:1, :] = zcol
    pad_ref[:, W + 1:W + 2, :] = zcol

    # ---- conv2 (3x3, stride 1, pad 1): bf16 im2col -> one long-K matmul ----
    idx = 0
    for ky in range(3):
        for kx in range(3):
            col_ref[:, idx * P:(idx + 1) * P] = (
                pad_ref[ky:ky + TH, kx:kx + W, :].reshape(TH * W, P))
            idx += 1
    h2 = jnp.dot(col_ref[...], w2_ref[...],
                 preferred_element_type=jnp.float32)                        # (TH*W, P)
    h2 = jnp.maximum(h2 + b2_ref[...], 0.0)

    # ---- conv3 (1x1, bn3 scale pre-folded) + bias + residual + relu ----
    o = jnp.dot(h2.astype(jnp.bfloat16), w3_ref[...],
                preferred_element_type=jnp.float32)                         # (TH*W, 4P)
    o = o + b3_ref[...]
    res = x_ref[0, pl.ds(r0, TH), :, :].reshape(TH * W, Cin).astype(jnp.float32)
    o = jnp.maximum(o + res, 0.0)
    out_ref[0] = o.reshape(TH, W, Cin).astype(out_ref.dtype)                # bf16 store


def bottleneck_pallas(x_nhwc, w1, w2, w3, s1, b1, s2, b2, s3, b3, *, row_tile=8):
    """x_nhwc: (N,H,W,4P) f32.  w1:(4P,P), w2:(3,3,P,P) HWIO, w3:(P,4P).
    s*/b*: 1-D folded BN scale / bias vectors.  Returns bf16 NHWC output."""
    N, H, W, Cin = x_nhwc.shape
    P = w1.shape[1]
    assert Cin == 4 * P and w2.shape == (3, 3, P, P) and w3.shape == (P, Cin)

    # Row-slab tile height (production: pick by VMEM budget per generation).
    TH = row_tile if (row_tile is not None and H % row_tile == 0) else H
    n_slabs = H // TH

    # Fold BN scales into the conv weights; bf16 operands for the MXU.
    w1e = (w1 * s1).astype(jnp.bfloat16)                               # (4P, P)
    w2e = (w2 * s2).reshape(9 * P, P).astype(jnp.bfloat16)             # (9P, P)
    w3e = (w3 * s3).astype(jnp.bfloat16)                               # (P, 4P)
    b1r = b1.reshape(1, P).astype(jnp.float32)
    b2r = b2.reshape(1, P).astype(jnp.float32)
    b3r = b3.reshape(1, Cin).astype(jnp.float32)
    x_bf = x_nhwc.astype(jnp.bfloat16)

    kernel = functools.partial(_bottleneck_kernel, H=H, W=W, TH=TH, P=P)
    full = lambda shape: pl.BlockSpec(shape, lambda n, i, _s=shape: (0,) * len(_s))

    return pl.pallas_call(
        kernel,
        out_shape=jax.ShapeDtypeStruct((N, H, W, Cin), jnp.bfloat16),
        grid=(N, n_slabs),
        in_specs=[
            # full image, resident across the slab axis (block index ignores i)
            pl.BlockSpec((1, H, W, Cin), lambda n, i: (n, 0, 0, 0)),    # x (bf16)
            full((Cin, P)),                                             # w1 * s1
            full((9 * P, P)),                                           # w2 * s2
            full((P, Cin)),                                             # w3 * s3
            full((1, P)), full((1, P)), full((1, Cin)),                 # bn biases
        ],
        out_specs=pl.BlockSpec((1, TH, W, Cin), lambda n, i: (n, i, 0, 0)),
        scratch_shapes=[
            pltpu.VMEM((TH + 2, W + 2, P), jnp.bfloat16),   # padded conv2 slab
            pltpu.VMEM((TH * W, 9 * P), jnp.bfloat16),      # im2col patches
        ],
        compiler_params=pltpu.CompilerParams(
            dimension_semantics=("parallel", "parallel"),
            vmem_limit_bytes=40 * 1024 * 1024),   # fits v7x's 64 MiB/TC VMEM
    )(x_bf, w1e, w2e, w3e, b1r, b2r, b3r)


# ------------------------- reference (plain JAX) -------------------------
def bottleneck_ref(x, w1e, b1, w2e_hwio, b2, w3e, b3):
    """Reference with BN scale already folded into the weights (bias added after)."""
    h = jnp.einsum('nhwc,cd->nhwd', x, w1e) + b1
    h = jnp.maximum(h, 0.0)
    h = lax.conv_general_dilated(h, w2e_hwio, window_strides=(1, 1), padding='SAME',
                                 dimension_numbers=('NHWC', 'HWIO', 'NHWC')) + b2
    h = jnp.maximum(h, 0.0)
    h = jnp.einsum('nhwc,cd->nhwd', h, w3e) + b3
    return jnp.maximum(h + x, 0.0)


def fold_bn(gamma, beta, mean, var, eps=1e-5):
    scale = gamma / jnp.sqrt(var + eps)
    bias = beta - mean * scale
    return scale, bias


if __name__ == "__main__":
    # small shapes consistent with the module: Bottleneck(inplanes=32, planes=8)
    N, H, W = 2, 16, 16
    planes = 8
    inplanes = planes * 4          # residual add requires inplanes == planes * expansion

    key = jax.random.PRNGKey(0)
    ks = jax.random.split(key, 16)

    x_nchw = jax.random.normal(ks[0], (N, inplanes, H, W), jnp.float32)

    # conv weights (bias=False in the module)
    w1 = jax.random.normal(ks[1], (inplanes, planes), jnp.float32) * 0.1         # 1x1
    w2 = jax.random.normal(ks[2], (3, 3, planes, planes), jnp.float32) * 0.1     # 3x3 HWIO
    w3 = jax.random.normal(ks[3], (planes, inplanes), jnp.float32) * 0.1         # 1x1

    # BatchNorm parameters (eval mode, folded)
    def bn_params(kg, kb, km, kv, c):
        gamma = 0.5 + jax.random.uniform(kg, (c,), jnp.float32)
        beta = jax.random.normal(kb, (c,), jnp.float32) * 0.1
        mean = jax.random.normal(km, (c,), jnp.float32) * 0.1
        var = 0.5 + jax.random.uniform(kv, (c,), jnp.float32)
        return fold_bn(gamma, beta, mean, var)

    s1, b1 = bn_params(ks[4], ks[5], ks[6], ks[7], planes)
    s2, b2 = bn_params(ks[8], ks[9], ks[10], ks[11], planes)
    s3, b3 = bn_params(ks[12], ks[13], ks[14], ks[15], inplanes)

    # NCHW -> NHWC for the kernel
    x_nhwc = jnp.transpose(x_nchw, (0, 2, 3, 1))

    out_nhwc = bottleneck_pallas(x_nhwc, w1, w2, w3, s1, b1, s2, b2, s3, b3,
                                 row_tile=8)   # 2 row slabs per image -> halo path tested
    out_nhwc = jax.block_until_ready(out_nhwc)
    out_nchw = jnp.transpose(out_nhwc, (0, 3, 1, 2))   # back to PyTorch layout

    # Reference uses the same bf16-rounded operands the kernel consumes; the kernel
    # additionally emits a bf16 output and bf16 intermediate activations, so the
    # tolerance absorbs bf16 output/activation rounding (intentional optimization).
    def r(a):
        return a.astype(jnp.bfloat16).astype(jnp.float32)

    ref = bottleneck_ref(r(x_nhwc), r(w1 * s1), b1, r(w2 * s2), b2, r(w3 * s3), b3)

    assert out_nchw.shape == (N, inplanes, H, W)
    out_f32 = out_nhwc.astype(jnp.float32)
    assert jnp.allclose(out_f32, ref, atol=5e-2, rtol=5e-2), "mismatch vs reference"

    print("KERNEL_OK")
</pallas_src>

<mosaic_0001>
module attributes {stable_mosaic.version = 11 : i64} {
  func.func @_bottleneck_kernel(%arg0: i32, %arg1: i32, %arg2: memref<1x16x16x32xbf16, #tpu.memory_space<vmem>>, %arg3: memref<32x8xbf16, #tpu.memory_space<vmem>>, %arg4: memref<72x8xbf16, #tpu.memory_space<vmem>>, %arg5: memref<8x32xbf16, #tpu.memory_space<vmem>>, %arg6: memref<1x8xf32, #tpu.memory_space<vmem>>, %arg7: memref<1x8xf32, #tpu.memory_space<vmem>>, %arg8: memref<1x32xf32, #tpu.memory_space<vmem>>, %arg9: memref<1x8x16x32xbf16, #tpu.memory_space<vmem>>, %arg10: memref<10x18x8xbf16, #tpu.memory_space<vmem>>, %arg11: memref<128x72xbf16, #tpu.memory_space<vmem>>) attributes {dimension_semantics = [#tpu.dimension_semantics<parallel>, #tpu.dimension_semantics<parallel>], iteration_bounds = array<i64: 2, 2>, scalar_prefetch = 0 : i64, scratch_operands = 2 : i64, tpu.core_type = #tpu.core_type<tc>, window_params = [{transform_indices = @transform_0, window_bounds = array<i64: 1, 16, 16, 32>}, {pipeline_mode = #tpu.pipeline_mode<synchronous>, transform_indices = @transform_1, window_bounds = array<i64: 32, 8>}, {pipeline_mode = #tpu.pipeline_mode<synchronous>, transform_indices = @transform_2, window_bounds = array<i64: 72, 8>}, {pipeline_mode = #tpu.pipeline_mode<synchronous>, transform_indices = @transform_3, window_bounds = array<i64: 8, 32>}, {pipeline_mode = #tpu.pipeline_mode<synchronous>, transform_indices = @transform_4, window_bounds = array<i64: 1, 8>}, {pipeline_mode = #tpu.pipeline_mode<synchronous>, transform_indices = @transform_5, window_bounds = array<i64: 1, 8>}, {pipeline_mode = #tpu.pipeline_mode<synchronous>, transform_indices = @transform_6, window_bounds = array<i64: 1, 32>}, {transform_indices = @transform_7, window_bounds = array<i64: 1, 8, 16, 32>}]} {
    %c8_i32 = arith.constant 8 : i32
    %0 = arith.muli %arg1, %c8_i32 : i32
    %c0 = arith.constant 0 : index
    %c0_0 = arith.constant 0 : index
    %1 = vector.load %arg3[%c0, %c0_0] : memref<32x8xbf16, #tpu.memory_space<vmem>>, vector<32x8xbf16>
    %c0_1 = arith.constant 0 : index
    %c0_2 = arith.constant 0 : index
    %2 = vector.load %arg6[%c0_1, %c0_2] : memref<1x8xf32, #tpu.memory_space<vmem>>, vector<1x8xf32>
    %c0_3 = arith.constant 0 : index
    %3 = arith.index_cast %0 : i32 to index
    %c0_4 = arith.constant 0 : index
    %c0_5 = arith.constant 0 : index
    %4 = vector.load %arg2[%c0_3, %3, %c0_4, %c0_5] : memref<1x16x16x32xbf16, #tpu.memory_space<vmem>>, vector<1x8x16x32xbf16>
    %5 = vector.shape_cast %4 : vector<1x8x16x32xbf16> to vector<8x16x32xbf16>
    %6 = vector.shape_cast %5 : vector<8x16x32xbf16> to vector<128x32xbf16>
    %cst = arith.constant dense<0.000000e+00> : vector<128x8xf32>
    %7 = tpu.matmul %6, %1, %cst {dimension_numbers = #tpu.dot_dimension_numbers<[1], [0], [0], [1], [0, 0, 1, 1], [], []>} : vector<128x32xbf16>, vector<32x8xbf16>, vector<128x8xf32> -> vector<128x8xf32>
    %8 = vector.broadcast %2 : vector<1x8xf32> to vector<128x8xf32>
    %9 = arith.addf %7, %8 : vector<128x8xf32>
    %cst_6 = arith.constant 0.000000e+00 : f32
    %10 = vector.broadcast %cst_6 : f32 to vector<128x8xf32>
    %11 = arith.maximumf %9, %10 : vector<128x8xf32>
    %12 = vector.shape_cast %11 : vector<128x8xf32> to vector<8x16x8xf32>
    %13 = arith.truncf %12 : vector<8x16x8xf32> to vector<8x16x8xbf16>
    %c1 = arith.constant 1 : index
    %c1_7 = arith.constant 1 : index
    %c0_8 = arith.constant 0 : index
    %14 = vector.load %arg10[%c1, %c1_7, %c0_8] : memref<10x18x8xbf16, #tpu.memory_space<vmem>>, vector<8x16x8xbf16>
    tpu.vector_store %arg10[%c1, %c1_7, %c0_8], %13 {strides = array<i32>} : memref<10x18x8xbf16, #tpu.memory_space<vmem>>, vector<8x16x8xbf16>,
    %c1_i32 = arith.constant 1 : i32
    %15 = arith.subi %0, %c1_i32 : i32
    %c0_i32 = arith.constant 0 : i32
    %16 = arith.maxsi %15, %c0_i32 : i32
    %c0_9 = arith.constant 0 : index
    %17 = arith.index_cast %16 : i32 to index
    %c0_10 = arith.constant 0 : index
    %c0_11 = arith.constant 0 : index
    %18 = vector.load %arg2[%c0_9, %17, %c0_10, %c0_11] : memref<1x16x16x32xbf16, #tpu.memory_space<vmem>>, vector<1x1x16x32xbf16>
    %19 = vector.shape_cast %18 : vector<1x1x16x32xbf16> to vector<1x16x32xbf16>
    %20 = vector.shape_cast %19 : vector<1x16x32xbf16> to vector<16x32xbf16>
    %cst_12 = arith.constant dense<0.000000e+00> : vector<16x8xf32>
    %21 = tpu.matmul %20, %1, %cst_12 {dimension_numbers = #tpu.dot_dimension_numbers<[1], [0], [0], [1], [0, 0, 1, 1], [], []>} : vector<16x32xbf16>, vector<32x8xbf16>, vector<16x8xf32> -> vector<16x8xf32>
    %22 = vector.broadcast %2 : vector<1x8xf32> to vector<16x8xf32>
    %23 = arith.addf %21, %22 : vector<16x8xf32>
    %cst_13 = arith.constant 0.000000e+00 : f32
    %24 = vector.broadcast %cst_13 : f32 to vector<16x8xf32>
    %25 = arith.maximumf %23, %24 : vector<16x8xf32>
    %c0_i32_14 = arith.constant 0 : i32
    %26 = arith.cmpi sgt, %arg1, %c0_i32_14 : i32
    %cst_15 = arith.constant 1.000000e+00 : f32
    %cst_16 = arith.constant 0.000000e+00 : f32
    %27 = arith.select %26, %cst_15, %cst_16 : f32
    %28 = vector.broadcast %27 : f32 to vector<16x8xf32>
    %29 = arith.mulf %25, %28 : vector<16x8xf32>
    %30 = vector.shape_cast %29 : vector<16x8xf32> to vector<1x16x8xf32>
    %31 = arith.truncf %30 : vector<1x16x8xf32> to vector<1x16x8xbf16>
    %c0_17 = arith.constant 0 : index
    %c1_18 = arith.constant 1 : index
    %c0_19 = arith.constant 0 : index
    %32 = vector.load %arg10[%c0_17, %c1_18, %c0_19] : memref<10x18x8xbf16, #tpu.memory_space<vmem>>, vector<1x16x8xbf16>
    tpu.vector_store %arg10[%c0_17, %c1_18, %c0_19], %31 {strides = array<i32>} : memref<10x18x8xbf16, #tpu.memory_space<vmem>>, vector<1x16x8xbf16>,
    %c8_i32_20 = arith.constant 8 : i32
    %33 = arith.addi %0, %c8_i32_20 : i32
    %c15_i32 = arith.constant 15 : i32
    %34 = arith.minsi %33, %c15_i32 : i32
    %c0_21 = arith.constant 0 : index
    %35 = arith.index_cast %34 : i32 to index
    %c0_22 = arith.constant 0 : index
    %c0_23 = arith.constant 0 : index
    %36 = vector.load %arg2[%c0_21, %35, %c0_22, %c0_23] : memref<1x16x16x32xbf16, #tpu.memory_space<vmem>>, vector<1x1x16x32xbf16>
    %37 = vector.shape_cast %36 : vector<1x1x16x32xbf16> to vector<1x16x32xbf16>
    %38 = vector.shape_cast %37 : vector<1x16x32xbf16> to vector<16x32xbf16>
    %cst_24 = arith.constant dense<0.000000e+00> : vector<16x8xf32>
    %39 = tpu.matmul %38, %1, %cst_24 {dimension_numbers = #tpu.dot_dimension_numbers<[1], [0], [0], [1], [0, 0, 1, 1], [], []>} : vector<16x32xbf16>, vector<32x8xbf16>, vector<16x8xf32> -> vector<16x8xf32>
    %40 = vector.broadcast %2 : vector<1x8xf32> to vector<16x8xf32>
    %41 = arith.addf %39, %40 : vector<16x8xf32>
    %cst_25 = arith.constant 0.000000e+00 : f32
    %42 = vector.broadcast %cst_25 : f32 to vector<16x8xf32>
    %43 = arith.maximumf %41, %42 : vector<16x8xf32>
    %c1_i32_26 = arith.constant 1 : i32
    %44 = arith.cmpi slt, %arg1, %c1_i32_26 : i32
    %cst_27 = arith.constant 1.000000e+00 : f32
    %cst_28 = arith.constant 0.000000e+00 : f32
    %45 = arith.select %44, %cst_27, %cst_28 : f32
    %46 = vector.broadcast %45 : f32 to vector<16x8xf32>
    %47 = arith.mulf %43, %46 : vector<16x8xf32>
    %48 = vector.shape_cast %47 : vector<16x8xf32> to vector<1x16x8xf32>
    %49 = arith.truncf %48 : vector<1x16x8xf32> to vector<1x16x8xbf16>
    %c9 = arith.constant 9 : index
    %c1_29 = arith.constant 1 : index
    %c0_30 = arith.constant 0 : index
    %50 = vector.load %arg10[%c9, %c1_29, %c0_30] : memref<10x18x8xbf16, #tpu.memory_space<vmem>>, vector<1x16x8xbf16>
    tpu.vector_store %arg10[%c9, %c1_29, %c0_30], %49 {strides = array<i32>} : memref<10x18x8xbf16, #tpu.memory_space<vmem>>, vector<1x16x8xbf16>,
    %cst_31 = arith.constant 0.000000e+00 : bf16
    %51 = vector.broadcast %cst_31 : bf16 to vector<10x1x8xbf16>
    %c0_32 = arith.constant 0 : index
    %c0_33 = arith.constant 0 : index
    %c0_34 = arith.constant 0 : index
    %52 = vector.load %arg10[%c0_32, %c0_33, %c0_34] : memref<10x18x8xbf16, #tpu.memory_space<vmem>>, vector<10x1x8xbf16>
    tpu.vector_store %arg10[%c0_32, %c0_33, %c0_34], %51 {strides = array<i32>} : memref<10x18x8xbf16, #tpu.memory_space<vmem>>, vector<10x1x8xbf16>,
    %c0_35 = arith.constant 0 : index
    %c17 = arith.constant 17 : index
    %c0_36 = arith.constant 0 : index
    %53 = vector.load %arg10[%c0_35, %c17, %c0_36] : memref<10x18x8xbf16, #tpu.memory_space<vmem>>, vector<10x1x8xbf16>
    tpu.vector_store %arg10[%c0_35, %c17, %c0_36], %51 {strides = array<i32>} : memref<10x18x8xbf16, #tpu.memory_space<vmem>>, vector<10x1x8xbf16>,
    %c0_37 = arith.constant 0 : index
    %c0_38 = arith.constant 0 : index
    %c0_39 = arith.constant 0 : index
    %54 = vector.load %arg10[%c0_37, %c0_38, %c0_39] : memref<10x18x8xbf16, #tpu.memory_space<vmem>>, vector<8x16x8xbf16>
    %55 = vector.shape_cast %54 : vector<8x16x8xbf16> to vector<128x8xbf16>
    %c0_40 = arith.constant 0 : index
    %c0_41 = arith.constant 0 : index
    %56 = vector.load %arg11[%c0_40, %c0_41] : memref<128x72xbf16, #tpu.memory_space<vmem>>, vector<128x8xbf16>
    tpu.vector_store %arg11[%c0_40, %c0_41], %55 {strides = array<i32>} : memref<128x72xbf16, #tpu.memory_space<vmem>>, vector<128x8xbf16>,
    %c0_42 = arith.constant 0 : index
    %c1_43 = arith.constant 1 : index
    %c0_44 = arith.constant 0 : index
    %57 = vector.load %arg10[%c0_42, %c1_43, %c0_44] : memref<10x18x8xbf16, #tpu.memory_space<vmem>>, vector<8x16x8xbf16>
    %58 = vector.shape_cast %57 : vector<8x16x8xbf16> to vector<128x8xbf16>
    %c0_45 = arith.constant 0 : index
    %c8 = arith.constant 8 : index
    %59 = vector.load %arg11[%c0_45, %c8] : memref<128x72xbf16, #tpu.memory_space<vmem>>, vector<128x8xbf16>
    tpu.vector_store %arg11[%c0_45, %c8], %58 {strides = array<i32>} : memref<128x72xbf16, #tpu.memory_space<vmem>>, vector<128x8xbf16>,
    %c0_46 = arith.constant 0 : index
    %c2 = arith.constant 2 : index
    %c0_47 = arith.constant 0 : index
    %60 = vector.load %arg10[%c0_46, %c2, %c0_47] : memref<10x18x8xbf16, #tpu.memory_space<vmem>>, vector<8x16x8xbf16>
    %61 = vector.shape_cast %60 : vector<8x16x8xbf16> to vector<128x8xbf16>
    %c0_48 = arith.constant 0 : index
    %c16 = arith.constant 16 : index
    %62 = vector.load %arg11[%c0_48, %c16] : memref<128x72xbf16, #tpu.memory_space<vmem>>, vector<128x8xbf16>
    tpu.vector_store %arg11[%c0_48, %c16], %61 {strides = array<i32>} : memref<128x72xbf16, #tpu.memory_space<vmem>>, vector<128x8xbf16>,
    %c1_49 = arith.constant 1 : index
    %c0_50 = arith.constant 0 : index
    %c0_51 = arith.constant 0 : index
    %63 = vector.load %arg10[%c1_49, %c0_50, %c0_51] : memref<10x18x8xbf16, #tpu.memory_space<vmem>>, vector<8x16x8xbf16>
    %64 = vector.shape_cast %63 : vector<8x16x8xbf16> to vector<128x8xbf16>
    %c0_52 = arith.constant 0 : index
    %c24 = arith.constant 24 : index
    %65 = vector.load %arg11[%c0_52, %c24] : memref<128x72xbf16, #tpu.memory_space<vmem>>, vector<128x8xbf16>
    tpu.vector_store %arg11[%c0_52, %c24], %64 {strides = array<i32>} : memref<128x72xbf16, #tpu.memory_space<vmem>>, vector<128x8xbf16>,
    %c1_53 = arith.constant 1 : index
    %c1_54 = arith.constant 1 : index
    %c0_55 = arith.constant 0 : index
    %66 = vector.load %arg10[%c1_53, %c1_54, %c0_55] : memref<10x18x8xbf16, #tpu.memory_space<vmem>>, vector<8x16x8xbf16>
    %67 = vector.shape_cast %66 : vector<8x16x8xbf16> to vector<128x8xbf16>
    %c0_56 = arith.constant 0 : index
    %c32 = arith.constant 32 : index
    %68 = vector.load %arg11[%c0_56, %c32] : memref<128x72xbf16, #tpu.memory_space<vmem>>, vector<128x8xbf16>
    tpu.vector_store %arg11[%c0_56, %c32], %67 {strides = array<i32>} : memref<128x72xbf16, #tpu.memory_space<vmem>>, vector<128x8xbf16>,
    %c1_57 = arith.constant 1 : index
    %c2_58 = arith.constant 2 : index
    %c0_59 = arith.constant 0 : index
    %69 = vector.load %arg10[%c1_57, %c2_58, %c0_59] : memref<10x18x8xbf16, #tpu.memory_space<vmem>>, vector<8x16x8xbf16>
    %70 = vector.shape_cast %69 : vector<8x16x8xbf16> to vector<128x8xbf16>
    %c0_60 = arith.constant 0 : index
    %c40 = arith.constant 40 : index
    %71 = vector.load %arg11[%c0_60, %c40] : memref<128x72xbf16, #tpu.memory_space<vmem>>, vector<128x8xbf16>
    tpu.vector_store %arg11[%c0_60, %c40], %70 {strides = array<i32>} : memref<128x72xbf16, #tpu.memory_space<vmem>>, vector<128x8xbf16>,
    %c2_61 = arith.constant 2 : index
    %c0_62 = arith.constant 0 : index
    %c0_63 = arith.constant 0 : index
    %72 = vector.load %arg10[%c2_61, %c0_62, %c0_63] : memref<10x18x8xbf16, #tpu.memory_space<vmem>>, vector<8x16x8xbf16>
    %73 = vector.shape_cast %72 : vector<8x16x8xbf16> to vector<128x8xbf16>
    %c0_64 = arith.constant 0 : index
    %c48 = arith.constant 48 : index
    %74 = vector.load %arg11[%c0_64, %c48] : memref<128x72xbf16, #tpu.memory_space<vmem>>, vector<128x8xbf16>
    tpu.vector_store %arg11[%c0_64, %c48], %73 {strides = array<i32>} : memref<128x72xbf16, #tpu.memory_space<vmem>>, vector<128x8xbf16>,
    %c2_65 = arith.constant 2 : index
    %c1_66 = arith.constant 1 : index
    %c0_67 = arith.constant 0 : index
    %75 = vector.load %arg10[%c2_65, %c1_66, %c0_67] : memref<10x18x8xbf16, #tpu.memory_space<vmem>>, vector<8x16x8xbf16>
    %76 = vector.shape_cast %75 : vector<8x16x8xbf16> to vector<128x8xbf16>
    %c0_68 = arith.constant 0 : index
    %c56 = arith.constant 56 : index
    %77 = vector.load %arg11[%c0_68, %c56] : memref<128x72xbf16, #tpu.memory_space<vmem>>, vector<128x8xbf16>
    tpu.vector_store %arg11[%c0_68, %c56], %76 {strides = array<i32>} : memref<128x72xbf16, #tpu.memory_space<vmem>>, vector<128x8xbf16>,
    %c2_69 = arith.constant 2 : index
    %c2_70 = arith.constant 2 : index
    %c0_71 = arith.constant 0 : index
    %78 = vector.load %arg10[%c2_69, %c2_70, %c0_71] : memref<10x18x8xbf16, #tpu.memory_space<vmem>>, vector<8x16x8xbf16>
    %79 = vector.shape_cast %78 : vector<8x16x8xbf16> to vector<128x8xbf16>
    %c0_72 = arith.constant 0 : index
    %c64 = arith.constant 64 : index
    %80 = vector.load %arg11[%c0_72, %c64] : memref<128x72xbf16, #tpu.memory_space<vmem>>, vector<128x8xbf16>
    tpu.vector_store %arg11[%c0_72, %c64], %79 {strides = array<i32>} : memref<128x72xbf16, #tpu.memory_space<vmem>>, vector<128x8xbf16>,
    %c0_73 = arith.constant 0 : index
    %c0_74 = arith.constant 0 : index
    %81 = vector.load %arg11[%c0_73, %c0_74] : memref<128x72xbf16, #tpu.memory_space<vmem>>, vector<128x72xbf16>
    %c0_75 = arith.constant 0 : index
    %c0_76 = arith.constant 0 : index
    %82 = vector.load %arg4[%c0_75, %c0_76] : memref<72x8xbf16, #tpu.memory_space<vmem>>, vector<72x8xbf16>
    %cst_77 = arith.constant dense<0.000000e+00> : vector<128x8xf32>
    %83 = tpu.matmul %81, %82, %cst_77 {dimension_numbers = #tpu.dot_dimension_numbers<[1], [0], [0], [1], [0, 0, 1, 1], [], []>} : vector<128x72xbf16>, vector<72x8xbf16>, vector<128x8xf32> -> vector<128x8xf32>
    %c0_78 = arith.constant 0 : index
    %c0_79 = arith.constant 0 : index
    %84 = vector.load %arg7[%c0_78, %c0_79] : memref<1x8xf32, #tpu.memory_space<vmem>>, vector<1x8xf32>
    %85 = vector.broadcast %84 : vector<1x8xf32> to vector<128x8xf32>
    %86 = arith.addf %83, %85 : vector<128x8xf32>
    %cst_80 = arith.constant 0.000000e+00 : f32
    %87 = vector.broadcast %cst_80 : f32 to vector<128x8xf32>
    %88 = arith.maximumf %86, %87 : vector<128x8xf32>
    %89 = arith.truncf %88 : vector<128x8xf32> to vector<128x8xbf16>
    %c0_81 = arith.constant 0 : index
    %c0_82 = arith.constant 0 : index
    %90 = vector.load %arg5[%c0_81, %c0_82] : memref<8x32xbf16, #tpu.memory_space<vmem>>, vector<8x32xbf16>
    %cst_83 = arith.constant dense<0.000000e+00> : vector<128x32xf32>
    %91 = tpu.matmul %89, %90, %cst_83 {dimension_numbers = #tpu.dot_dimension_numbers<[1], [0], [0], [1], [0, 0, 1, 1], [], []>} : vector<128x8xbf16>, vector<8x32xbf16>, vector<128x32xf32> -> vector<128x32xf32>
    %c0_84 = arith.constant 0 : index
    %c0_85 = arith.constant 0 : index
    %92 = vector.load %arg8[%c0_84, %c0_85] : memref<1x32xf32, #tpu.memory_space<vmem>>, vector<1x32xf32>
    %93 = vector.broadcast %92 : vector<1x32xf32> to vector<128x32xf32>
    %94 = arith.addf %91, %93 : vector<128x32xf32>
    %c0_86 = arith.constant 0 : index
    %95 = arith.index_cast %0 : i32 to index
    %c0_87 = arith.constant 0 : index
    %c0_88 = arith.constant 0 : index
    %96 = vector.load %arg2[%c0_86, %95, %c0_87, %c0_88] : memref<1x16x16x32xbf16, #tpu.memory_space<vmem>>, vector<1x8x16x32xbf16>
    %97 = vector.shape_cast %96 : vector<1x8x16x32xbf16> to vector<8x16x32xbf16>
    %98 = vector.shape_cast %97 : vector<8x16x32xbf16> to vector<128x32xbf16>
    %99 = arith.extf %98 : vector<128x32xbf16> to vector<128x32xf32>
    %100 = arith.addf %94, %99 : vector<128x32xf32>
    %cst_89 = arith.constant 0.000000e+00 : f32
    %101 = vector.broadcast %cst_89 : f32 to vector<128x32xf32>
    %102 = arith.maximumf %100, %101 : vector<128x32xf32>
    %103 = vector.shape_cast %102 : vector<128x32xf32> to vector<8x16x32xf32>
    %104 = arith.truncf %103 : vector<8x16x32xf32> to vector<8x16x32xbf16>
    %c0_90 = arith.constant 0 : index
    %c0_91 = arith.constant 0 : index
    %c0_92 = arith.constant 0 : index
    %c0_93 = arith.constant 0 : index
    %105 = vector.load %arg9[%c0_90, %c0_91, %c0_92, %c0_93] : memref<1x8x16x32xbf16, #tpu.memory_space<vmem>>, vector<1x8x16x32xbf16>
    %106 = vector.shape_cast %105 : vector<1x8x16x32xbf16> to vector<8x16x32xbf16>
    %107 = vector.shape_cast %104 : vector<8x16x32xbf16> to vector<1x8x16x32xbf16>
    tpu.vector_store %arg9[%c0_90, %c0_91, %c0_92, %c0_93], %107 {strides = array<i32>} : memref<1x8x16x32xbf16, #tpu.memory_space<vmem>>, vector<1x8x16x32xbf16>,
    return
  }
  func.func @transform_0(%arg0: i32, %arg1: i32) -> (i32, i32, i32, i32) {
    %c0_i32 = arith.constant 0 : i32
    %c0_i32_0 = arith.constant 0 : i32
    %c0_i32_1 = arith.constant 0 : i32
    %c0_i32_2 = arith.constant 0 : i32
    return %arg0, %c0_i32, %c0_i32_0, %c0_i32_1 : i32, i32, i32, i32
  }
  func.func @transform_1(%arg0: i32, %arg1: i32) -> (i32, i32) {
    %c0_i32 = arith.constant 0 : i32
    %c0_i32_0 = arith.constant 0 : i32
    %c0_i32_1 = arith.constant 0 : i32
    return %c0_i32, %c0_i32_0 : i32, i32
  }
  func.func @transform_2(%arg0: i32, %arg1: i32) -> (i32, i32) {
    %c0_i32 = arith.constant 0 : i32
    %c0_i32_0 = arith.constant 0 : i32
    %c0_i32_1 = arith.constant 0 : i32
    return %c0_i32, %c0_i32_0 : i32, i32
  }
  func.func @transform_3(%arg0: i32, %arg1: i32) -> (i32, i32) {
    %c0_i32 = arith.constant 0 : i32
    %c0_i32_0 = arith.constant 0 : i32
    %c0_i32_1 = arith.constant 0 : i32
    return %c0_i32, %c0_i32_0 : i32, i32
  }
  func.func @transform_4(%arg0: i32, %arg1: i32) -> (i32, i32) {
    %c0_i32 = arith.constant 0 : i32
    %c0_i32_0 = arith.constant 0 : i32
    %c0_i32_1 = arith.constant 0 : i32
    return %c0_i32, %c0_i32_0 : i32, i32
  }
  func.func @transform_5(%arg0: i32, %arg1: i32) -> (i32, i32) {
    %c0_i32 = arith.constant 0 : i32
    %c0_i32_0 = arith.constant 0 : i32
    %c0_i32_1 = arith.constant 0 : i32
    return %c0_i32, %c0_i32_0 : i32, i32
  }
  func.func @transform_6(%arg0: i32, %arg1: i32) -> (i32, i32) {
    %c0_i32 = arith.constant 0 : i32
    %c0_i32_0 = arith.constant 0 : i32
    %c0_i32_1 = arith.constant 0 : i32
    return %c0_i32, %c0_i32_0 : i32, i32
  }
  func.func @transform_7(%arg0: i32, %arg1: i32) -> (i32, i32, i32, i32) {
    %c0_i32 = arith.constant 0 : i32
    %c0_i32_0 = arith.constant 0 : i32
    %c0_i32_1 = arith.constant 0 : i32
    return %arg0, %arg1, %c0_i32, %c0_i32_0 : i32, i32, i32, i32
  }
}

</mosaic_0001>

<llo_original>
// kernel: tpu_custom_call.1
$region0: #{tpu_custom_call.1}
  #allocation0 [shape = 'u32[]', space=smem, size = 0x4, offset = 0x4, fixed_abs, tag = 'smem constant byte address 0x4 - core index']
  #allocation1 [shape = 'u32[144,128]{1,0:T(1,128)}', space=vmem, size = 0x12000, scoped, tag = 'internal scratch']
  #allocation2 [shape = 'bf16[10,18,8]{2,1,0:T(8,128)(2,1)}', space=vmem, size = 0xf000, scoped, tag = 'scratch operand']
  #allocation3 [shape = 'bf16[128,72]{1,0:T(16,128)(2,1)}', space=vmem, size = 0x8000, scoped, tag = 'scratch operand']
  %s0 = inlined_call_operand.hbm [shape: bf16[2,16,16,32], index: 0, kind: input, shape index: {}]
  %s1 = inlined_call_operand.vmem [shape: bf16[32,8], index: 1, kind: input, shape index: {}]
  %s2 = inlined_call_operand.vmem [shape: bf16[72,8], index: 2, kind: input, shape index: {}]
  %s3 = inlined_call_operand.vmem [shape: bf16[8,32], index: 3, kind: input, shape index: {}]
  %s4 = inlined_call_operand.vmem [shape: f32[1,8], index: 4, kind: input, shape index: {}]
  %s5 = inlined_call_operand.vmem [shape: f32[1,8], index: 5, kind: input, shape index: {}]
  %s6 = inlined_call_operand.vmem [shape: f32[1,32], index: 6, kind: input, shape index: {}]
  %s7 = inlined_call_operand.hbm [shape: bf16[2,16,16,32], index: 7, kind: output, shape index: {}]
  %s8 = sld [smem:[#allocation0]]
  $region65: #{tpu_custom_call.1} parent=0
    _
  %s10 = ssub.s32 1, %s8
  %s11 = scalar_select 0, %s10, %s8
  $region1: #{tpu_custom_call.1} parent=0
    #allocation4 [shape = 'u8[131072]{0}', space=vmem, size = 0x20000, scoped, tag = 'input window, operand 0']
    #allocation5 [shape = 's32[2]{0}', space=sflag, size = 0x8, scoped, tag = 'scoped memory for tpu_custom_call.1']
    #allocation6 [shape = 's32[2]{0}', space=sflag, size = 0x8, scoped, tag = 'scoped memory for tpu_custom_call.1']
    #allocation7 [shape = 'u8[65536]{0}', space=vmem, size = 0x10000, scoped, tag = 'output window, operand 0']
    %12 = vsyncpa [#allocation5], 0
    %s13 = scalar_lea.sflag [#allocation5], 1
    %14 = vsyncpa %s13, 0
    %15 = vsyncpa [#allocation6], 0
    %s16 = scalar_lea.sflag [#allocation6], 1
    %17 = vsyncpa %s16, 0
    loop: start=0, step=1, limit=6
    $region2: #{tpu_custom_call.1} parent=1 // loop_pre_header
      _
    $region3: #{tpu_custom_call.1} parent=1 // loop_header
      %s19 = sphi 0, %s23
      %p20 = scmp.ge.s32.totalorder %s19, 6
      %s26 = sphi 0, %s38
      %s27 = sphi 0, %s34
      %s28 = sphi 0, %s26
      %s29 = sphi 0, %s27
      %s30 = sphi 0, %s28
      %s31 = sphi 0, %s29
      %s41 = sphi 0, %s43
      %s44 = sphi 0, %s41
      %s45 = sphi 0, %s44
      %s61 = sphi 0, %s45
      %s65 = sphi 0, %s65
      %s67 = sphi 0, %s65
      %s68 = sphi 0, %s67
      %s82 = sphi 0, %s68
      %s86 = sphi 0, %s86
      %s88 = sphi 0, %s86
      %s89 = sphi 0, %s88
      %s103 = sphi 0, %s89
      %s107 = sphi 0, %s107
      %s109 = sphi 0, %s107
      %s110 = sphi 0, %s109
      %s124 = sphi 0, %s110
      %s128 = sphi 0, %s128
      %s130 = sphi 0, %s128
      %s131 = sphi 0, %s130
      %s145 = sphi 0, %s131
      %s149 = sphi 0, %s149
      %s151 = sphi 0, %s149
      %s152 = sphi 0, %s151
      %s166 = sphi 0, %s152
      %s170 = sphi 0, %s170
      %s172 = sphi 0, %s170
      %s173 = sphi 0, %s172
      %s187 = sphi 0, %s173
      %s195 = sphi 0, %s197
      %s198 = sphi 0, %s195
      %s199 = sphi 0, %s198
      %s215 = sphi 0, %s199
    $region4: #{tpu_custom_call.1} parent=1 // loop_header_branch
      %22 = sbr.rel (%p20) target = $region8
    $region5: #{tpu_custom_call.1} parent=1 // loop_body
      %s24 = ssub.s32 %s19, 1
      %s25 = ssub.s32 %s19, 2
      %s32 = sadd.s32 1, %s27
      %p33 = scmp.ge.s32.totalorder %s32, 2
      %s34 = scalar_select %p33, 0, %s32
      %s35 = sadd.s32 1, %s26
      %s36 = scalar_select %p33, %s35, %s26
      %p37 = scmp.ge.s32.totalorder %s36, 2
      %s38 = scalar_select %p37, 0, %s36
      %s39 = ssub.s32 %s26, %s38
      %p40 = scmp.eq.s32.totalorder %s39, 0
      %s42 = sadd.s32 %s41, 1
      %s43 = scalar_select %p40, %s41, %s42
      %p46 = pneg %p40
      %p47 = scmp.eq.s32.totalorder %s19, 3
      %p48 = por %p46, %p47
      %p49 = scmp.ne.s32.totalorder %s41, %s44
      %p50 = scmp.eq.s32.totalorder %s19, 0
      %p51 = por %p49, %p50
      %p52 = scmp.ne.s32.totalorder %s41, %s44
      %p53 = scmp.eq.s32.totalorder %s24, 3
      %p54 = por %p52, %p53
      %p55 = scmp.ne.s32.totalorder %s44, %s45
      %p56 = scmp.eq.s32.totalorder %s24, 0
      %p57 = por %p55, %p56
      %p58 = scmp.ne.s32.totalorder %s44, %s45
      %p59 = scmp.eq.s32.totalorder %s25, 3
      %p60 = por %p58, %p59
      %p62 = scmp.ne.s32.totalorder %s45, %s61
      %p63 = scmp.eq.s32.totalorder %s25, 0
      %p64 = por %p62, %p63
      %s66 = sadd.s32 %s65, 1
      %p69 = scmp.eq.s32.totalorder %s19, 3
      %p70 = scmp.ne.s32.totalorder %s65, %s67
      %p71 = scmp.eq.s32.totalorder %s19, 0
      %p72 = por %p70, %p71
      %p73 = scmp.ne.s32.totalorder %s65, %s67
      %p74 = scmp.eq.s32.totalorder %s24, 3
      %p75 = por %p73, %p74
      %p76 = scmp.ne.s32.totalorder %s67, %s68
      %p77 = scmp.eq.s32.totalorder %s24, 0
      %p78 = por %p76, %p77
      %p79 = scmp.ne.s32.totalorder %s67, %s68
      %p80 = scmp.eq.s32.totalorder %s25, 3
      %p81 = por %p79, %p80
      %p83 = scmp.ne.s32.totalorder %s68, %s82
      %p84 = scmp.eq.s32.totalorder %s25, 0
      %p85 = por %p83, %p84
      %s87 = sadd.s32 %s86, 1
      %p90 = scmp.eq.s32.totalorder %s19, 3
      %p91 = scmp.ne.s32.totalorder %s86, %s88
      %p92 = scmp.eq.s32.totalorder %s19, 0
      %p93 = por %p91, %p92
      %p94 = scmp.ne.s32.totalorder %s86, %s88
      %p95 = scmp.eq.s32.totalorder %s24, 3
      %p96 = por %p94, %p95
      %p97 = scmp.ne.s32.totalorder %s88, %s89
      %p98 = scmp.eq.s32.totalorder %s24, 0
      %p99 = por %p97, %p98
      %p100 = scmp.ne.s32.totalorder %s88, %s89
      %p101 = scmp.eq.s32.totalorder %s25, 3
      %p102 = por %p100, %p101
      %p104 = scmp.ne.s32.totalorder %s89, %s103
      %p105 = scmp.eq.s32.totalorder %s25, 0
      %p106 = por %p104, %p105
      %s108 = sadd.s32 %s107, 1
      %p111 = scmp.eq.s32.totalorder %s19, 3
      %p112 = scmp.ne.s32.totalorder %s107, %s109
      %p113 = scmp.eq.s32.totalorder %s19, 0
      %p114 = por %p112, %p113
      %p115 = scmp.ne.s32.totalorder %s107, %s109
      %p116 = scmp.eq.s32.totalorder %s24, 3
      %p117 = por %p115, %p116
      %p118 = scmp.ne.s32.totalorder %s109, %s110
      %p119 = scmp.eq.s32.totalorder %s24, 0
      %p120 = por %p118, %p119
      %p121 = scmp.ne.s32.totalorder %s109, %s110
      %p122 = scmp.eq.s32.totalorder %s25, 3
      %p123 = por %p121, %p122
      %p125 = scmp.ne.s32.totalorder %s110, %s124
      %p126 = scmp.eq.s32.totalorder %s25, 0
      %p127 = por %p125, %p126
      %s129 = sadd.s32 %s128, 1
      %p132 = scmp.eq.s32.totalorder %s19, 3
      %p133 = scmp.ne.s32.totalorder %s128, %s130
      %p134 = scmp.eq.s32.totalorder %s19, 0
      %p135 = por %p133, %p134
      %p136 = scmp.ne.s32.totalorder %s128, %s130
      %p137 = scmp.eq.s32.totalorder %s24, 3
      %p138 = por %p136, %p137
      %p139 = scmp.ne.s32.totalorder %s130, %s131
      %p140 = scmp.eq.s32.totalorder %s24, 0
      %p141 = por %p139, %p140
      %p142 = scmp.ne.s32.totalorder %s130, %s131
      %p143 = scmp.eq.s32.totalorder %s25, 3
      %p144 = por %p142, %p143
      %p146 = scmp.ne.s32.totalorder %s131, %s145
      %p147 = scmp.eq.s32.totalorder %s25, 0
      %p148 = por %p146, %p147
      %s150 = sadd.s32 %s149, 1
      %p153 = scmp.eq.s32.totalorder %s19, 3
      %p154 = scmp.ne.s32.totalorder %s149, %s151
      %p155 = scmp.eq.s32.totalorder %s19, 0
      %p156 = por %p154, %p155
      %p157 = scmp.ne.s32.totalorder %s149, %s151
      %p158 = scmp.eq.s32.totalorder %s24, 3
      %p159 = por %p157, %p158
      %p160 = scmp.ne.s32.totalorder %s151, %s152
      %p161 = scmp.eq.s32.totalorder %s24, 0
      %p162 = por %p160, %p161
      %p163 = scmp.ne.s32.totalorder %s151, %s152
      %p164 = scmp.eq.s32.totalorder %s25, 3
      %p165 = por %p163, %p164
      %p167 = scmp.ne.s32.totalorder %s152, %s166
      %p168 = scmp.eq.s32.totalorder %s25, 0
      %p169 = por %p167, %p168
      %s171 = sadd.s32 %s170, 1
      %p174 = scmp.eq.s32.totalorder %s19, 3
      %p175 = scmp.ne.s32.totalorder %s170, %s172
      %p176 = scmp.eq.s32.totalorder %s19, 0
      %p177 = por %p175, %p176
      %p178 = scmp.ne.s32.totalorder %s170, %s172
      %p179 = scmp.eq.s32.totalorder %s24, 3
      %p180 = por %p178, %p179
      %p181 = scmp.ne.s32.totalorder %s172, %s173
      %p182 = scmp.eq.s32.totalorder %s24, 0
      %p183 = por %p181, %p182
      %p184 = scmp.ne.s32.totalorder %s172, %s173
      %p185 = scmp.eq.s32.totalorder %s25, 3
      %p186 = por %p184, %p185
      %p188 = scmp.ne.s32.totalorder %s173, %s187
      %p189 = scmp.eq.s32.totalorder %s25, 0
      %p190 = por %p188, %p189
      %s191 = ssub.s32 %s26, %s38
      %s192 = ssub.s32 %s27, %s34
      %s193 = sor.u32 %s191, %s192
      %p194 = scmp.eq.s32.totalorder %s193, 0
      %s196 = sadd.s32 %s195, 1
      %s197 = scalar_select %p194, %s195, %s196
      %p200 = pneg %p194
      %p201 = scmp.eq.s32.totalorder %s19, 3
      %p202 = por %p200, %p201
      %p203 = scmp.ne.s32.totalorder %s195, %s198
      %p204 = scmp.eq.s32.totalorder %s19, 0
      %p205 = por %p203, %p204
      %p206 = scmp.ne.s32.totalorder %s195, %s198
      %p207 = scmp.eq.s32.totalorder %s24, 3
      %p208 = por %p206, %p207
      %p209 = scmp.ne.s32.totalorder %s198, %s199
      %p210 = scmp.eq.s32.totalorder %s24, 0
      %p211 = por %p209, %p210
      %p212 = scmp.ne.s32.totalorder %s198, %s199
      %p213 = scmp.eq.s32.totalorder %s25, 3
      %p214 = por %p212, %p213
      %p216 = scmp.ne.s32.totalorder %s199, %s215
      %p217 = scmp.eq.s32.totalorder %s25, 0
      %p218 = por %p216, %p217
      %p219 = scmp.le.s32.totalorder 1, %s19
      %p220 = scmp.lt.s32.totalorder %s19, 5
      %p221 = pnand %p219, %p220
      %p222 = pneg %p221
      // Predicated region
      $region9: #{tpu_custom_call.1} parent=5 // pred_check
        _
      $region10: #{tpu_custom_call.1} parent=5 // pred_check_branch
        %224 = sbr.rel (%p221) target = $region12
      $region11: #{tpu_custom_call.1} parent=5 // pred_region
        %s225 = ssub.s32 %s19, 1
        // Predicated region
        $region13: #{tpu_custom_call.1} parent=11 // pred_check
          %p226 = pneg %p78
        $region14: #{tpu_custom_call.1} parent=11 // pred_check_branch
          %228 = sbr.rel (%p226) target = $region16
        $region15: #{tpu_custom_call.1} parent=11 // pred_region
          _
        $region16: #{tpu_custom_call.1} parent=11 // pred_fallthru
          _
        // Predicated region
        $region17: #{tpu_custom_call.1} parent=11 // pred_check
          %p229 = pneg %p99
        $region18: #{tpu_custom_call.1} parent=11 // pred_check_branch
          %231 = sbr.rel (%p229) target = $region20
        $region19: #{tpu_custom_call.1} parent=11 // pred_region
          _
        $region20: #{tpu_custom_call.1} parent=11 // pred_fallthru
          _
        // Predicated region
        $region21: #{tpu_custom_call.1} parent=11 // pred_check
          %p232 = pneg %p120
        $region22: #{tpu_custom_call.1} parent=11 // pred_check_branch
          %234 = sbr.rel (%p232) target = $region24
        $region23: #{tpu_custom_call.1} parent=11 // pred_region
          _
        $region24: #{tpu_custom_call.1} parent=11 // pred_fallthru
          _
        // Predicated region
        $region25: #{tpu_custom_call.1} parent=11 // pred_check
          %p235 = pneg %p141
        $region26: #{tpu_custom_call.1} parent=11 // pred_check_branch
          %237 = sbr.rel (%p235) target = $region28
        $region27: #{tpu_custom_call.1} parent=11 // pred_region
          _
        $region28: #{tpu_custom_call.1} parent=11 // pred_fallthru
          _
        // Predicated region
        $region29: #{tpu_custom_call.1} parent=11 // pred_check
          %p238 = pneg %p162
        $region30: #{tpu_custom_call.1} parent=11 // pred_check_branch
          %240 = sbr.rel (%p238) target = $region32
        $region31: #{tpu_custom_call.1} parent=11 // pred_region
          _
        $region32: #{tpu_custom_call.1} parent=11 // pred_fallthru
          _
        // Predicated region
        $region33: #{tpu_custom_call.1} parent=11 // pred_check
          %p241 = pneg %p183
        $region34: #{tpu_custom_call.1} parent=11 // pred_check_branch
          %243 = sbr.rel (%p241) target = $region36
        $region35: #{tpu_custom_call.1} parent=11 // pred_region
          _
        $region36: #{tpu_custom_call.1} parent=11 // pred_fallthru
          _
      $region12: #{tpu_custom_call.1} parent=5 // pred_fallthru
        _
      %p244 = scmp.lt.s32.totalorder %s19, 4
      // Predicated region
      $region37: #{tpu_custom_call.1} parent=5 // pred_check
        %p245 = pneg %p244
      $region38: #{tpu_custom_call.1} parent=5 // pred_check_branch
        %247 = sbr.rel (%p245) target = $region40
      $region39: #{tpu_custom_call.1} parent=5 // pred_region
        // Predicated region
        $region41: #{tpu_custom_call.1} parent=39 // pred_check
          %p248 = pneg %p51
        $region42: #{tpu_custom_call.1} parent=39 // pred_check_branch
          %250 = sbr.rel (%p248) target = $region44
        $region43: #{tpu_custom_call.1} parent=39 // pred_region
          %s251 = sand.u32 %s41, 1
          %s252 = scalar_lea.sflag [#allocation5], %s251
          %s253 = sand.u32 %s41, 1
          %s254 = smul.addr %s253, 128
          %s255 = scalar_lea.vmem [#allocation4], %s254
          %s257 = ssub.s32 2048, 2048
          %258 = vsyncadd %s252, %s257
          %s259 = smul.addr %s26, 32
          %s260 = smul.addr %s259, 64
          %s261 = scalar_lea.hbm %s0, %s260
          %s262 = sshll.u32 %s255, 4
          %s263 = int_to_ptr.vmem [resolvable:$true] %s262
          %268 = dma.hbm_to_vmem [thread:$0]  %s261, 2048, %s263, %s252, 64, 64, 4
        $region44: #{tpu_custom_call.1} parent=39 // pred_fallthru
          _
      $region40: #{tpu_custom_call.1} parent=5 // pred_fallthru
        _
      %p269 = scmp.le.s32.totalorder 1, %s19
      %p270 = scmp.lt.s32.totalorder %s19, 5
      %p271 = pnand %p269, %p270
      %p272 = pneg %p271
      // Predicated region
      $region45: #{tpu_custom_call.1} parent=5 // pred_check
        _
      $region46: #{tpu_custom_call.1} parent=5 // pred_check_branch
        %274 = sbr.rel (%p271) target = $region48
      $region47: #{tpu_custom_call.1} parent=5 // pred_region
        %s275 = ssub.s32 %s19, 1
        %s276 = sand.u32 %s44, 1
        %s277 = scalar_lea.sflag [#allocation5], %s276
        %s278 = sand.u32 %s44, 1
        %s279 = smul.addr %s278, 128
        %s280 = scalar_lea.vmem [#allocation4], %s279
        // Predicated region
        $region49: #{tpu_custom_call.1} parent=47 // pred_check
          %p281 = pneg %p57
        $region50: #{tpu_custom_call.1} parent=47 // pred_check_branch
          %283 = sbr.rel (%p281) target = $region52
        $region51: #{tpu_custom_call.1} parent=47 // pred_region
          %284 = dma.done %s277, 2048
        $region52: #{tpu_custom_call.1} parent=47 // pred_fallthru
          _
        %s285 = sand.u32 %s44, 1
        %s286 = scalar_lea.sflag [#allocation5], %s285
        %s287 = sand.u32 %s44, 1
        %s288 = smul.addr %s287, 128
        %s289 = scalar_lea.vmem [#allocation4], %s288
        %p290 = pneg %p57
        %p291 = pneg %p54
        %p292 = pneg %p78
        %p293 = pneg %p75
        %p294 = pneg %p99
        %p295 = pneg %p96
        %p296 = pneg %p120
        %p297 = pneg %p117
        %p298 = pneg %p141
        %p299 = pneg %p138
        %p300 = pneg %p162
        %p301 = pneg %p159
        %p302 = pneg %p183
        %p303 = pneg %p180
        %p304 = pneg %p211
        %p305 = pneg %p208
        %s306 = sand.u32 %s198, 1
        %s307 = scalar_lea.sflag [#allocation6], %s306
        %s308 = sand.u32 %s198, 1
        %s309 = smul.addr %s308, 64
        %s310 = scalar_lea.vmem [#allocation7], %s309
        %s311 = smul.u32 8, %s29
        %s313 = smul.u32 %s29, 8
        %v314 = vld [vmem:[%s1] sm:$0xf]
        %v315 = vld [vmem:[%s1 + $0x4] sm:$0xf]
        %v316 = vld [vmem:[%s1 + $0x8] sm:$0xf]
        %v317 = vld [vmem:[%s1 + $0xc] sm:$0xf]
        %v318 = vld [vmem:[%s4] sm:$0x1]
        %s319 = smul.u32 %s313, 2
        %s320 = smul.addr %s319, 4
        %s321 = scalar_lea.vmem %s280, %s320 [#allocation4]
        %v322 = vld [vmem:[%s321] sm:$0xf]
        %v323 = vld [vmem:[%s321 + $0x4] sm:$0xf]
        %v324 = vld [vmem:[%s321 + $0x8] sm:$0xf]
        %v325 = vld [vmem:[%s321 + $0xc] sm:$0xf]
        %v326 = vld [vmem:[%s321 + $0x10] sm:$0xf]
        %v327 = vld [vmem:[%s321 + $0x14] sm:$0xf]
        %v328 = vld [vmem:[%s321 + $0x18] sm:$0xf]
        %v329 = vld [vmem:[%s321 + $0x1c] sm:$0xf]
        %v330 = vld [vmem:[%s321 + $0x20] sm:$0xf]
        %v331 = vld [vmem:[%s321 + $0x24] sm:$0xf]
        %v332 = vld [vmem:[%s321 + $0x28] sm:$0xf]
        %v333 = vld [vmem:[%s321 + $0x2c] sm:$0xf]
        %v334 = vld [vmem:[%s321 + $0x30] sm:$0xf]
        %v335 = vld [vmem:[%s321 + $0x34] sm:$0xf]
        %v336 = vld [vmem:[%s321 + $0x38] sm:$0xf]
        %v337 = vld [vmem:[%s321 + $0x3c] sm:$0xf]
        %v339 = vlaneseq
        %v340 = vshrl.u32 %v339, 7
        %v341 = vsub.s32 0, %v340
        %v342 = vrot.slane %v318, %v341
        %v360 = vunpack.c.l.b16 %v322
        %v361 = vunpack.c.l.b16 %v323
        %v362 = vunpack.c.l.b16 %v324
        %v363 = vunpack.c.l.b16 %v325
        %v364 = vunpack.c.l.b16 %v326
        %v365 = vunpack.c.l.b16 %v327
        %v366 = vunpack.c.l.b16 %v328
        %v367 = vunpack.c.l.b16 %v329
        %v368 = vunpack.c.l.b16 %v330
        %v369 = vunpack.c.l.b16 %v331
        %v370 = vunpack.c.l.b16 %v332
        %v371 = vunpack.c.l.b16 %v333
        %v372 = vunpack.c.l.b16 %v334
        %v373 = vunpack.c.l.b16 %v335
        %v374 = vunpack.c.l.b16 %v336
        %v375 = vunpack.c.l.b16 %v337
        %v376 = vpack.c.b16 %v361, %v360
        %v377 = vpack.c.b16 %v363, %v362
        %v378 = vpack.c.b16 %v365, %v364
        %v379 = vpack.c.b16 %v367, %v366
        %v380 = vpack.c.b16 %v369, %v368
        %v381 = vpack.c.b16 %v371, %v370
        %v382 = vpack.c.b16 %v373, %v372
        %v383 = vpack.c.b16 %v375, %v374
        %v388 = vunpack.c.l.b16 %v314
        %v389 = vunpack.c.l.b16 %v315
        %v390 = vunpack.c.l.b16 %v316
        %v391 = vunpack.c.l.b16 %v317
        %v392 = vpack.c.b16 %v389, %v388
        %v393 = vpack.c.b16 %v391, %v390
        %vm396 = vcmask 261120
        %v398 = vsel %vm396, %v376, 0
        %v401 = vsel %vm396, %v377, 0
        %v404 = vsel %vm396, %v378, 0
        %v407 = vsel %vm396, %v379, 0
        %v410 = vsel %vm396, %v380, 0
        %v413 = vsel %vm396, %v381, 0
        %v416 = vsel %vm396, %v382, 0
        %v419 = vsel %vm396, %v383, 0
        %421 = vmatprep.subr.bf16.mxu0 0
        %422 = vmatpush1.bf16.msra.mxu0 %v392
        %423 = vmatprep.subr.bf16.mxu0 0
        %424 = vmatpush1.bf16.msra.mxu0 %v393
        %425 = vmatprep.subr.bf16.mxu0 0
        %426 = vmatpush1.bf16.msra.mxu0 0
        %427 = vmatprep.subr.bf16.mxu0 0
        %428 = vmatpush1.bf16.msra.mxu0 0
        %429 = vmatprep.subr.bf16.mxu0 0
        %430 = vmatpush1.bf16.msra.mxu0 0
        %431 = vmatprep.subr.bf16.mxu0 0
        %432 = vmatpush1.bf16.msra.mxu0 0
        %433 = vmatprep.subr.bf16.mxu0 0
        %434 = vmatpush1.bf16.msra.mxu0 0
        %435 = vmatprep.subr.bf16.mxu0 0
        %436 = vmatpush1.bf16.msra.mxu0 0
        %437 = vmatprep.subr.bf16.mxu0 0
        %438 = vmatpush1.bf16.msra.mxu0 0
        %439 = vmatprep.subr.bf16.mxu0 0
        %440 = vmatpush1.bf16.msra.mxu0 0
        %441 = vmatprep.subr.bf16.mxu0 0
        %442 = vmatpush1.bf16.msra.mxu0 0
        %443 = vmatprep.subr.bf16.mxu0 0
        %444 = vmatpush1.bf16.msra.mxu0 0
        %445 = vmatprep.subr.bf16.mxu0 0
        %446 = vmatpush1.bf16.msra.mxu0 0
        %447 = vmatprep.subr.bf16.mxu0 0
        %448 = vmatpush1.bf16.msra.mxu0 0
        %449 = vmatprep.subr.bf16.mxu0 0
        %450 = vmatpush1.bf16.msra.mxu0 0
        %451 = vmatprep.subr.bf16.mxu0 0
        %452 = vmatpush1.bf16.msra.mxu0 0
        %453 = vmatprep.mubr.bf16.mxu0 0
        %454 = vmatmul.mubr.bf16.gmra.mrb[0].mxu0 %v398
        %v455 = vpop.f32.mrb[0].mxu0
        %v456 = vadd.f32 %v342, %v455
        %v457 = vpop.f32.mrb[0].mxu0
        %v458 = vpop.f32.mrb[0].mxu0
        %v459 = vadd.f32 %v342, %v458
        %v460 = vpop.f32.mrb[0].mxu0
        %461 = vmatprep.mubr.bf16.mxu0 0
        %462 = vmatmul.mubr.bf16.gmra.mrb[0].mxu0 %v401
        %v463 = vpop.f32.mrb[0].mxu0
        %v464 = vadd.f32 %v342, %v463
        %v465 = vpop.f32.mrb[0].mxu0
        %v466 = vpop.f32.mrb[0].mxu0
        %v467 = vadd.f32 %v342, %v466
        %v468 = vpop.f32.mrb[0].mxu0
        %469 = vmatprep.mubr.bf16.mxu0 0
        %470 = vmatmul.mubr.bf16.gmra.mrb[0].mxu0 %v404
        %v471 = vpop.f32.mrb[0].mxu0
        %v472 = vadd.f32 %v342, %v471
        %v473 = vpop.f32.mrb[0].mxu0
        %v474 = vpop.f32.mrb[0].mxu0
        %v475 = vadd.f32 %v342, %v474
        %v476 = vpop.f32.mrb[0].mxu0
        %477 = vmatprep.mubr.bf16.mxu0 0
        %478 = vmatmul.mubr.bf16.gmra.mrb[0].mxu0 %v407
        %v479 = vpop.f32.mrb[0].mxu0
        %v480 = vadd.f32 %v342, %v479
        %v481 = vpop.f32.mrb[0].mxu0
        %v482 = vpop.f32.mrb[0].mxu0
        %v483 = vadd.f32 %v342, %v482
        %v484 = vpop.f32.mrb[0].mxu0
        %485 = vmatprep.mubr.bf16.mxu0 0
        %486 = vmatmul.mubr.bf16.gmra.mrb[0].mxu0 %v410
        %v487 = vpop.f32.mrb[0].mxu0
        %v488 = vadd.f32 %v342, %v487
        %v489 = vpop.f32.mrb[0].mxu0
        %v490 = vpop.f32.mrb[0].mxu0
        %v491 = vadd.f32 %v342, %v490
        %v492 = vpop.f32.mrb[0].mxu0
        %493 = vmatprep.mubr.bf16.mxu0 0
        %494 = vmatmul.mubr.bf16.gmra.mrb[0].mxu0 %v413
        %v495 = vpop.f32.mrb[0].mxu0
        %v496 = vadd.f32 %v342, %v495
        %v497 = vpop.f32.mrb[0].mxu0
        %v498 = vpop.f32.mrb[0].mxu0
        %v499 = vadd.f32 %v342, %v498
        %v500 = vpop.f32.mrb[0].mxu0
        %501 = vmatprep.mubr.bf16.mxu0 0
        %502 = vmatmul.mubr.bf16.gmra.mrb[0].mxu0 %v416
        %v503 = vpop.f32.mrb[0].mxu0
        %v504 = vadd.f32 %v342, %v503
        %v505 = vpop.f32.mrb[0].mxu0
        %v506 = vpop.f32.mrb[0].mxu0
        %v507 = vadd.f32 %v342, %v506
        %v508 = vpop.f32.mrb[0].mxu0
        %509 = vmatprep.mubr.bf16.mxu0 0
        %510 = vmatmul.mubr.bf16.gmra.mrb[0].mxu0 %v419
        %v511 = vpop.f32.mrb[0].mxu0
        %v512 = vadd.f32 %v342, %v511
        %v513 = vpop.f32.mrb[0].mxu0
        %v514 = vpop.f32.mrb[0].mxu0
        %v515 = vadd.f32 %v342, %v514
        %v516 = vpop.f32.mrb[0].mxu0
        %517 = vdwg.mxu0
        %v518 = vmax.f32 %v456, 0.0
        %v519 = vmax.f32 %v459, 0.0
        %v520 = vmax.f32 %v464, 0.0
        %v521 = vmax.f32 %v467, 0.0
        %v522 = vmax.f32 %v472, 0.0
        %v523 = vmax.f32 %v475, 0.0
        %v524 = vmax.f32 %v480, 0.0
        %v525 = vmax.f32 %v483, 0.0
        %v526 = vmax.f32 %v488, 0.0
        %v527 = vmax.f32 %v491, 0.0
        %v528 = vmax.f32 %v496, 0.0
        %v529 = vmax.f32 %v499, 0.0
        %v530 = vmax.f32 %v504, 0.0
        %v531 = vmax.f32 %v507, 0.0
        %v532 = vmax.f32 %v512, 0.0
        %v533 = vmax.f32 %v515, 0.0
        %v534 = vpack.c.bf16 %v519, %v518
        %v535 = vpack.c.bf16 %v521, %v520
        %v536 = vpack.c.bf16 %v523, %v522
        %v537 = vpack.c.bf16 %v525, %v524
        %v538 = vpack.c.bf16 %v527, %v526
        %v539 = vpack.c.bf16 %v529, %v528
        %v540 = vpack.c.bf16 %v531, %v530
        %v541 = vpack.c.bf16 %v533, %v532
        %v550 = vunpack.c.l.b16 %v534
        %v551 = vunpack.c.h.b16 %v534
        %v552 = vunpack.c.l.b16 %v535
        %v553 = vunpack.c.h.b16 %v535
        %v554 = vunpack.c.l.b16 %v536
        %v555 = vunpack.c.h.b16 %v536
        %v556 = vunpack.c.l.b16 %v537
        %v557 = vunpack.c.h.b16 %v537
        %v558 = vunpack.c.l.b16 %v538
        %v559 = vunpack.c.h.b16 %v538
        %v560 = vunpack.c.l.b16 %v539
        %v561 = vunpack.c.h.b16 %v539
        %v562 = vunpack.c.l.b16 %v540
        %v563 = vunpack.c.h.b16 %v540
        %v564 = vunpack.c.l.b16 %v541
        %v565 = vunpack.c.h.b16 %v541
        %v566 = vpack.c.b16 %v550, %v550
        %v567 = vpack.c.b16 %v551, %v551
        %v568 = vpack.c.b16 %v552, %v552
        %v569 = vpack.c.b16 %v553, %v553
        %v570 = vpack.c.b16 %v554, %v554
        %v571 = vpack.c.b16 %v555, %v555
        %v572 = vpack.c.b16 %v556, %v556
        %v573 = vpack.c.b16 %v557, %v557
        %v574 = vpack.c.b16 %v558, %v558
        %v575 = vpack.c.b16 %v559, %v559
        %v576 = vpack.c.b16 %v560, %v560
        %v577 = vpack.c.b16 %v561, %v561
        %v578 = vpack.c.b16 %v562, %v562
        %v579 = vpack.c.b16 %v563, %v563
        %v580 = vpack.c.b16 %v564, %v564
        %v581 = vpack.c.b16 %v565, %v565
        %vm582 = vsmask.f32 256
        %vm583 = vsmask.f32 4368
        %vm584 = vmor %vm582, %vm583
        %v586 = vshrl.u32 %v566, 16
        %v588 = vrot.slane %v586, 7
        %v589 = vshll.u32 %v566, 16
        %v591 = vor.u32 %v588, %v589
        %v592 = vrot.slane %v588, 4
        %v594 = vshrl.u32 %v567, 16
        %v596 = vrot.slane %v594, 7
        %v597 = vshll.u32 %v567, 16
        %v599 = vor.u32 %v596, %v597
        %v600 = vsel %vm584, %v592, %v599
        %v601 = vrot.slane %v596, 4
        %v603 = vshrl.u32 %v568, 16
        %v605 = vrot.slane %v603, 7
        %v606 = vshll.u32 %v568, 16
        %v608 = vor.u32 %v605, %v606
        %v609 = vrot.slane %v605, 4
        %v611 = vshrl.u32 %v569, 16
        %v613 = vrot.slane %v611, 7
        %v614 = vshll.u32 %v569, 16
        %v616 = vor.u32 %v613, %v614
        %v617 = vsel %vm584, %v609, %v616
        %v618 = vrot.slane %v613, 4
        %v620 = vshrl.u32 %v570, 16
        %v622 = vrot.slane %v620, 7
        %v623 = vshll.u32 %v570, 16
        %v625 = vor.u32 %v622, %v623
        %v626 = vrot.slane %v622, 4
        %v628 = vshrl.u32 %v571, 16
        %v630 = vrot.slane %v628, 7
        %v631 = vshll.u32 %v571, 16
        %v633 = vor.u32 %v630, %v631
        %v634 = vsel %vm584, %v626, %v633
        %v635 = vrot.slane %v630, 4
        %v637 = vshrl.u32 %v572, 16
        %v639 = vrot.slane %v637, 7
        %v640 = vshll.u32 %v572, 16
        %v642 = vor.u32 %v639, %v640
        %v643 = vrot.slane %v639, 4
        %v645 = vshrl.u32 %v573, 16
        %v647 = vrot.slane %v645, 7
        %v648 = vshll.u32 %v573, 16
        %v650 = vor.u32 %v647, %v648
        %v651 = vsel %vm584, %v643, %v650
        %v652 = vrot.slane %v647, 4
        %v654 = vshrl.u32 %v574, 16
        %v656 = vrot.slane %v654, 7
        %v657 = vshll.u32 %v574, 16
        %v659 = vor.u32 %v656, %v657
        %v660 = vrot.slane %v656, 4
        %v662 = vshrl.u32 %v575, 16
        %v664 = vrot.slane %v662, 7
        %v665 = vshll.u32 %v575, 16
        %v667 = vor.u32 %v664, %v665
        %v668 = vsel %vm584, %v660, %v667
        %v669 = vrot.slane %v664, 4
        %v671 = vshrl.u32 %v576, 16
        %v673 = vrot.slane %v671, 7
        %v674 = vshll.u32 %v576, 16
        %v676 = vor.u32 %v673, %v674
        %v677 = vrot.slane %v673, 4
        %v679 = vshrl.u32 %v577, 16
        %v681 = vrot.slane %v679, 7
        %v682 = vshll.u32 %v577, 16
        %v684 = vor.u32 %v681, %v682
        %v685 = vsel %vm584, %v677, %v684
        %v686 = vrot.slane %v681, 4
        %v688 = vshrl.u32 %v578, 16
        %v690 = vrot.slane %v688, 7
        %v691 = vshll.u32 %v578, 16
        %v693 = vor.u32 %v690, %v691
        %v694 = vrot.slane %v690, 4
        %v696 = vshrl.u32 %v579, 16
        %v698 = vrot.slane %v696, 7
        %v699 = vshll.u32 %v579, 16
        %v701 = vor.u32 %v698, %v699
        %v702 = vsel %vm584, %v694, %v701
        %v703 = vrot.slane %v698, 4
        %v705 = vshrl.u32 %v580, 16
        %v707 = vrot.slane %v705, 7
        %v708 = vshll.u32 %v580, 16
        %v710 = vor.u32 %v707, %v708
        %v711 = vrot.slane %v707, 4
        %v713 = vshrl.u32 %v581, 16
        %v715 = vrot.slane %v713, 7
        %v716 = vshll.u32 %v581, 16
        %v718 = vor.u32 %v715, %v716
        %v719 = vsel %vm584, %v711, %v718
        %v720 = vrot.slane %v715, 4
        %s745 = scalar_lea.vmem [#allocation2], 12
        %vm746 = vcmask 60416
        %vm747 = vsmask.f32 7938
        %vm748 = vmand %vm746, %vm747
        %v749 = vld [vmem:[%s745] sm:$0xf]
        %v750 = vsel %vm748, %v591, %v749
        %751 = vst [vmem:[%s745] sm:$0xf] %v750
        %vm752 = vcmask 60416
        %753 = vst.msk [vmem:[%s745 + $0x4] sm:$0xf] %vm752, %v600
        %vm754 = vcmask 57344
        %vm755 = vmand %vm754, %vm582
        %v756 = vld [vmem:[%s745 + $0x8] sm:$0x1]
        %v757 = vsel %vm755, %v601, %v756
        %758 = vst [vmem:[%s745 + $0x8] sm:$0x1] %v757
        %v759 = vld [vmem:[%s745 + $0xc] sm:$0xf]
        %v760 = vsel %vm748, %v608, %v759
        %761 = vst [vmem:[%s745 + $0xc] sm:$0xf] %v760
        %762 = vst.msk [vmem:[%s745 + $0x10] sm:$0xf] %vm752, %v617
        %v763 = vld [vmem:[%s745 + $0x14] sm:$0x1]
        %v764 = vsel %vm755, %v618, %v763
        %765 = vst [vmem:[%s745 + $0x14] sm:$0x1] %v764
        %v766 = vld [vmem:[%s745 + $0x18] sm:$0xf]
        %v767 = vsel %vm748, %v625, %v766
        %768 = vst [vmem:[%s745 + $0x18] sm:$0xf] %v767
        %769 = vst.msk [vmem:[%s745 + $0x1c] sm:$0xf] %vm752, %v634
        %v770 = vld [vmem:[%s745 + $0x20] sm:$0x1]
        %v771 = vsel %vm755, %v635, %v770
        %772 = vst [vmem:[%s745 + $0x20] sm:$0x1] %v771
        %v773 = vld [vmem:[%s745 + $0x24] sm:$0xf]
        %v774 = vsel %vm748, %v642, %v773
        %775 = vst [vmem:[%s745 + $0x24] sm:$0xf] %v774
        %776 = vst.msk [vmem:[%s745 + $0x28] sm:$0xf] %vm752, %v651
        %v777 = vld [vmem:[%s745 + $0x2c] sm:$0x1]
        %v778 = vsel %vm755, %v652, %v777
        %779 = vst [vmem:[%s745 + $0x2c] sm:$0x1] %v778
        %v780 = vld [vmem:[%s745 + $0x30] sm:$0xf]
        %v781 = vsel %vm748, %v659, %v780
        %782 = vst [vmem:[%s745 + $0x30] sm:$0xf] %v781
        %783 = vst.msk [vmem:[%s745 + $0x34] sm:$0xf] %vm752, %v668
        %v784 = vld [vmem:[%s745 + $0x38] sm:$0x1]
        %v785 = vsel %vm755, %v669, %v784
        %786 = vst [vmem:[%s745 + $0x38] sm:$0x1] %v785
        %v787 = vld [vmem:[%s745 + $0x3c] sm:$0xf]
        %v788 = vsel %vm748, %v676, %v787
        %789 = vst [vmem:[%s745 + $0x3c] sm:$0xf] %v788
        %790 = vst.msk [vmem:[%s745 + $0x40] sm:$0xf] %vm752, %v685
        %v791 = vld [vmem:[%s745 + $0x44] sm:$0x1]
        %v792 = vsel %vm755, %v686, %v791
        %793 = vst [vmem:[%s745 + $0x44] sm:$0x1] %v792
        %v794 = vld [vmem:[%s745 + $0x48] sm:$0xf]
        %v795 = vsel %vm748, %v693, %v794
        %796 = vst [vmem:[%s745 + $0x48] sm:$0xf] %v795
        %797 = vst.msk [vmem:[%s745 + $0x4c] sm:$0xf] %vm752, %v702
        %v798 = vld [vmem:[%s745 + $0x50] sm:$0x1]
        %v799 = vsel %vm755, %v703, %v798
        %800 = vst [vmem:[%s745 + $0x50] sm:$0x1] %v799
        %v801 = vld [vmem:[%s745 + $0x54] sm:$0xf]
        %v802 = vsel %vm748, %v710, %v801
        %803 = vst [vmem:[%s745 + $0x54] sm:$0xf] %v802
        %804 = vst.msk [vmem:[%s745 + $0x58] sm:$0xf] %vm752, %v719
        %v805 = vld [vmem:[%s745 + $0x5c] sm:$0x1]
        %v806 = vsel %vm755, %v720, %v805
        %807 = vst [vmem:[%s745 + $0x5c] sm:$0x1] %v806
        %s808 = ssub.s32 %s313, 1
        %p809 = scmp.gt.s32.totalorder %s808, 0
        %s810 = scalar_select %p809, %s808, 0
        %s811 = smul.u32 %s810, 2
        %s812 = smul.addr %s811, 4
        %s813 = scalar_lea.vmem %s280, %s812 [#allocation4]
        %v814 = vld [vmem:[%s813] sm:$0xf]
        %v815 = vld [vmem:[%s813 + $0x4] sm:$0xf]
        %v818 = vunpack.c.l.b16 %v814
        %v819 = vunpack.c.l.b16 %v815
        %v820 = vpack.c.b16 %v819, %v818
        %v822 = vsel %vm396, %v820, 0
        %824 = vmatprep.subr.bf16.mxu0 0
        %825 = vmatpush1.bf16.msra.mxu0 %v392
        %826 = vmatprep.subr.bf16.mxu0 0
        %827 = vmatpush1.bf16.msra.mxu0 %v393
        %828 = vmatprep.subr.bf16.mxu0 0
        %829 = vmatpush1.bf16.msra.mxu0 0
        %830 = vmatprep.subr.bf16.mxu0 0
        %831 = vmatpush1.bf16.msra.mxu0 0
        %832 = vmatprep.subr.bf16.mxu0 0
        %833 = vmatpush1.bf16.msra.mxu0 0
        %834 = vmatprep.subr.bf16.mxu0 0
        %835 = vmatpush1.bf16.msra.mxu0 0
        %836 = vmatprep.subr.bf16.mxu0 0
        %837 = vmatpush1.bf16.msra.mxu0 0
        %838 = vmatprep.subr.bf16.mxu0 0
        %839 = vmatpush1.bf16.msra.mxu0 0
        %840 = vmatprep.subr.bf16.mxu0 0
        %841 = vmatpush1.bf16.msra.mxu0 0
        %842 = vmatprep.subr.bf16.mxu0 0
        %843 = vmatpush1.bf16.msra.mxu0 0
        %844 = vmatprep.subr.bf16.mxu0 0
        %845 = vmatpush1.bf16.msra.mxu0 0
        %846 = vmatprep.subr.bf16.mxu0 0
        %847 = vmatpush1.bf16.msra.mxu0 0
        %848 = vmatprep.subr.bf16.mxu0 0
        %849 = vmatpush1.bf16.msra.mxu0 0
        %850 = vmatprep.subr.bf16.mxu0 0
        %851 = vmatpush1.bf16.msra.mxu0 0
        %852 = vmatprep.subr.bf16.mxu0 0
        %853 = vmatpush1.bf16.msra.mxu0 0
        %854 = vmatprep.subr.bf16.mxu0 0
        %855 = vmatpush1.bf16.msra.mxu0 0
        %856 = vmatprep.mubr.bf16.mxu0 0
        %857 = vmatmul.mubr.bf16.gmra.mrb[0].mxu0 %v822
        %v858 = vpop.f32.mrb[0].mxu0
        %v859 = vadd.f32 %v342, %v858
        %v860 = vpop.f32.mrb[0].mxu0
        %v861 = vpop.f32.mrb[0].mxu0
        %v862 = vadd.f32 %v342, %v861
        %v863 = vpop.f32.mrb[0].mxu0
        %864 = vdwg.mxu0
        %v865 = vmax.f32 %v859, 0.0
        %v866 = vmax.f32 %v862, 0.0
        %p867 = scmp.gt.s32.totalorder %s29, 0
        %s868 = scalar_select %p867, 1.0, 0.0
        %v869 = vstv %s868
        %v870 = vmul.f32 %v865, %v869
        %v871 = vmul.f32 %v866, %v869
        %v872 = vpack.c.bf16 %v871, %v870
        %v874 = vunpack.c.l.b16 %v872
        %v875 = vunpack.c.h.b16 %v872
        %v876 = vpack.c.b16 %v874, %v874
        %v877 = vpack.c.b16 %v875, %v875
        %v879 = vshrl.u32 %v876, 16
        %v881 = vrot.slane %v879, 7
        %v882 = vshll.u32 %v876, 16
        %v884 = vor.u32 %v881, %v882
        %v885 = vrot.slane %v881, 4
        %v887 = vshrl.u32 %v877, 16
        %v889 = vrot.slane %v887, 7
        %v890 = vshll.u32 %v877, 16
        %v892 = vor.u32 %v889, %v890
        %v893 = vsel %vm584, %v885, %v892
        %v894 = vrot.slane %v889, 4
        %v898 = vld [vmem:[#allocation2] sm:$0xf]
        %v899 = vsel %vm748, %v884, %v898
        %900 = vst [vmem:[#allocation2] sm:$0xf] %v899
        %901 = vst.msk [vmem:[#allocation2 + $0x4] sm:$0xf] %vm752, %v893
        %v902 = vld [vmem:[#allocation2 + $0x8] sm:$0x1]
        %v903 = vsel %vm755, %v894, %v902
        %904 = vst [vmem:[#allocation2 + $0x8] sm:$0x1] %v903
        %s905 = sadd.s32 %s313, 8
        %p906 = scmp.lt.s32.totalorder %s905, 15
        %s907 = scalar_select %p906, %s905, 15
        %s908 = smul.u32 %s907, 2
        %s909 = smul.addr %s908, 4
        %s910 = scalar_lea.vmem %s280, %s909 [#allocation4]
        %v911 = vld [vmem:[%s910] sm:$0xf]
        %v912 = vld [vmem:[%s910 + $0x4] sm:$0xf]
        %v915 = vunpack.c.l.b16 %v911
        %v916 = vunpack.c.l.b16 %v912
        %v917 = vpack.c.b16 %v916, %v915
        %v919 = vsel %vm396, %v917, 0
        %921 = vmatprep.subr.bf16.mxu0 0
        %922 = vmatpush1.bf16.msra.mxu0 %v392
        %923 = vmatprep.subr.bf16.mxu0 0
        %924 = vmatpush1.bf16.msra.mxu0 %v393
        %925 = vmatprep.subr.bf16.mxu0 0
        %926 = vmatpush1.bf16.msra.mxu0 0
        %927 = vmatprep.subr.bf16.mxu0 0
        %928 = vmatpush1.bf16.msra.mxu0 0
        %929 = vmatprep.subr.bf16.mxu0 0
        %930 = vmatpush1.bf16.msra.mxu0 0
        %931 = vmatprep.subr.bf16.mxu0 0
        %932 = vmatpush1.bf16.msra.mxu0 0
        %933 = vmatprep.subr.bf16.mxu0 0
        %934 = vmatpush1.bf16.msra.mxu0 0
        %935 = vmatprep.subr.bf16.mxu0 0
        %936 = vmatpush1.bf16.msra.mxu0 0
        %937 = vmatprep.subr.bf16.mxu0 0
        %938 = vmatpush1.bf16.msra.mxu0 0
        %939 = vmatprep.subr.bf16.mxu0 0
        %940 = vmatpush1.bf16.msra.mxu0 0
        %941 = vmatprep.subr.bf16.mxu0 0
        %942 = vmatpush1.bf16.msra.mxu0 0
        %943 = vmatprep.subr.bf16.mxu0 0
        %944 = vmatpush1.bf16.msra.mxu0 0
        %945 = vmatprep.subr.bf16.mxu0 0
        %946 = vmatpush1.bf16.msra.mxu0 0
        %947 = vmatprep.subr.bf16.mxu0 0
        %948 = vmatpush1.bf16.msra.mxu0 0
        %949 = vmatprep.subr.bf16.mxu0 0
        %950 = vmatpush1.bf16.msra.mxu0 0
        %951 = vmatprep.subr.bf16.mxu0 0
        %952 = vmatpush1.bf16.msra.mxu0 0
        %953 = vmatprep.mubr.bf16.mxu0 0
        %954 = vmatmul.mubr.bf16.gmra.mrb[0].mxu0 %v919
        %v955 = vpop.f32.mrb[0].mxu0
        %v956 = vadd.f32 %v342, %v955
        %v957 = vpop.f32.mrb[0].mxu0
        %v958 = vpop.f32.mrb[0].mxu0
        %v959 = vadd.f32 %v342, %v958
        %v960 = vpop.f32.mrb[0].mxu0
        %961 = vdwg.mxu0
        %v962 = vmax.f32 %v956, 0.0
        %v963 = vmax.f32 %v959, 0.0
        %p964 = scmp.lt.s32.totalorder %s29, 1
        %s965 = scalar_select %p964, 1.0, 0.0
        %v966 = vstv %s965
        %v967 = vmul.f32 %v962, %v966
        %v968 = vmul.f32 %v963, %v966
        %v969 = vpack.c.bf16 %v968, %v967
        %v971 = vunpack.c.l.b16 %v969
        %v972 = vunpack.c.h.b16 %v969
        %v973 = vpack.c.b16 %v971, %v971
        %v974 = vpack.c.b16 %v972, %v972
        %v976 = vshrl.u32 %v973, 16
        %v978 = vrot.slane %v976, 7
        %v979 = vshll.u32 %v973, 16
        %v981 = vor.u32 %v978, %v979
        %v982 = vrot.slane %v978, 4
        %v984 = vshrl.u32 %v974, 16
        %v986 = vrot.slane %v984, 7
        %v987 = vshll.u32 %v974, 16
        %v989 = vor.u32 %v986, %v987
        %v990 = vsel %vm584, %v982, %v989
        %v991 = vrot.slane %v986, 4
        %s995 = scalar_lea.vmem [#allocation2], 108
        %v996 = vld [vmem:[%s995] sm:$0xf]
        %v997 = vsel %vm748, %v981, %v996
        %998 = vst [vmem:[%s995] sm:$0xf] %v997
        %999 = vst.msk [vmem:[%s995 + $0x4] sm:$0xf] %vm752, %v990
        %v1000 = vld [vmem:[%s995 + $0x8] sm:$0x1]
        %v1001 = vsel %vm755, %v991, %v1000
        %1002 = vst [vmem:[%s995 + $0x8] sm:$0x1] %v1001
        %v1003 = vld [vmem:[#allocation2] sm:$0x1]
        %v1004 = vsel %vm755, 0, %v1003
        %1005 = vst [vmem:[#allocation2] sm:$0x1] %v1004
        %v1006 = vld [vmem:[#allocation2 + $0xc] sm:$0x1]
        %v1007 = vsel %vm755, 0, %v1006
        %1008 = vst [vmem:[#allocation2 + $0xc] sm:$0x1] %v1007
        %v1009 = vld [vmem:[#allocation2 + $0x18] sm:$0x1]
        %v1010 = vsel %vm755, 0, %v1009
        %1011 = vst [vmem:[#allocation2 + $0x18] sm:$0x1] %v1010
        %v1012 = vld [vmem:[#allocation2 + $0x24] sm:$0x1]
        %v1013 = vsel %vm755, 0, %v1012
        %1014 = vst [vmem:[#allocation2 + $0x24] sm:$0x1] %v1013
        %v1015 = vld [vmem:[#allocation2 + $0x30] sm:$0x1]
        %v1016 = vsel %vm755, 0, %v1015
        %1017 = vst [vmem:[#allocation2 + $0x30] sm:$0x1] %v1016
        %v1018 = vld [vmem:[#allocation2 + $0x3c] sm:$0x1]
        %v1019 = vsel %vm755, 0, %v1018
        %1020 = vst [vmem:[#allocation2 + $0x3c] sm:$0x1] %v1019
        %v1021 = vld [vmem:[#allocation2 + $0x48] sm:$0x1]
        %v1022 = vsel %vm755, 0, %v1021
        %1023 = vst [vmem:[#allocation2 + $0x48] sm:$0x1] %v1022
        %v1024 = vld [vmem:[#allocation2 + $0x54] sm:$0x1]
        %v1025 = vsel %vm755, 0, %v1024
        %1026 = vst [vmem:[#allocation2 + $0x54] sm:$0x1] %v1025
        %v1027 = vld [vmem:[#allocation2 + $0x60] sm:$0x1]
        %v1028 = vsel %vm755, 0, %v1027
        %1029 = vst [vmem:[#allocation2 + $0x60] sm:$0x1] %v1028
        %v1030 = vld [vmem:[#allocation2 + $0x6c] sm:$0x1]
        %v1031 = vsel %vm755, 0, %v1030
        %1032 = vst [vmem:[#allocation2 + $0x6c] sm:$0x1] %v1031
        %vm1033 = vmand %vm754, %vm747
        %v1034 = vld [vmem:[#allocation2 + $0x8] sm:$0x1]
        %v1035 = vsel %vm1033, 0, %v1034
        %1036 = vst [vmem:[#allocation2 + $0x8] sm:$0x1] %v1035
        %v1037 = vld [vmem:[#allocation2 + $0x14] sm:$0x1]
        %v1038 = vsel %vm1033, 0, %v1037
        %1039 = vst [vmem:[#allocation2 + $0x14] sm:$0x1] %v1038
        %v1040 = vld [vmem:[#allocation2 + $0x20] sm:$0x1]
        %v1041 = vsel %vm1033, 0, %v1040
        %1042 = vst [vmem:[#allocation2 + $0x20] sm:$0x1] %v1041
        %v1043 = vld [vmem:[#allocation2 + $0x2c] sm:$0x1]
        %v1044 = vsel %vm1033, 0, %v1043
        %1045 = vst [vmem:[#allocation2 + $0x2c] sm:$0x1] %v1044
        %v1046 = vld [vmem:[#allocation2 + $0x38] sm:$0x1]
        %v1047 = vsel %vm1033, 0, %v1046
        %1048 = vst [vmem:[#allocation2 + $0x38] sm:$0x1] %v1047
        %v1049 = vld [vmem:[#allocation2 + $0x44] sm:$0x1]
        %v1050 = vsel %vm1033, 0, %v1049
        %1051 = vst [vmem:[#allocation2 + $0x44] sm:$0x1] %v1050
        %v1052 = vld [vmem:[#allocation2 + $0x50] sm:$0x1]
        %v1053 = vsel %vm1033, 0, %v1052
        %1054 = vst [vmem:[#allocation2 + $0x50] sm:$0x1] %v1053
        %v1055 = vld [vmem:[#allocation2 + $0x5c] sm:$0x1]
        %v1056 = vsel %vm1033, 0, %v1055
        %1057 = vst [vmem:[#allocation2 + $0x5c] sm:$0x1] %v1056
        %v1058 = vld [vmem:[#allocation2 + $0x68] sm:$0x1]
        %v1059 = vsel %vm1033, 0, %v1058
        %1060 = vst [vmem:[#allocation2 + $0x68] sm:$0x1] %v1059
        %v1061 = vld [vmem:[#allocation2 + $0x74] sm:$0x1]
        %v1062 = vsel %vm1033, 0, %v1061
        %1063 = vst [vmem:[#allocation2 + $0x74] sm:$0x1] %v1062
        %v1064 = vld [vmem:[#allocation2] sm:$0xf]
        %v1065 = vld [vmem:[#allocation2 + $0x4] sm:$0xf]
        %v1066 = vld [vmem:[#allocation2 + $0xc] sm:$0xf]
        %v1067 = vld [vmem:[#allocation2 + $0x10] sm:$0xf]
        %v1068 = vld [vmem:[#allocation2 + $0x18] sm:$0xf]
        %v1069 = vld [vmem:[#allocation2 + $0x1c] sm:$0xf]
        %v1070 = vld [vmem:[#allocation2 + $0x24] sm:$0xf]
        %v1071 = vld [vmem:[#allocation2 + $0x28] sm:$0xf]
        %v1072 = vld [vmem:[#allocation2 + $0x30] sm:$0xf]
        %v1073 = vld [vmem:[#allocation2 + $0x34] sm:$0xf]
        %v1074 = vld [vmem:[#allocation2 + $0x3c] sm:$0xf]
        %v1075 = vld [vmem:[#allocation2 + $0x40] sm:$0xf]
        %v1076 = vld [vmem:[#allocation2 + $0x48] sm:$0xf]
        %v1077 = vld [vmem:[#allocation2 + $0x4c] sm:$0xf]
        %v1078 = vld [vmem:[#allocation2 + $0x54] sm:$0xf]
        %v1079 = vld [vmem:[#allocation2 + $0x58] sm:$0xf]
        %v1096 = vunpack.c.l.b16 %v1064
        %v1097 = vunpack.c.l.b16 %v1065
        %v1098 = vunpack.c.l.b16 %v1066
        %v1099 = vunpack.c.l.b16 %v1067
        %v1100 = vunpack.c.l.b16 %v1068
        %v1101 = vunpack.c.l.b16 %v1069
        %v1102 = vunpack.c.l.b16 %v1070
        %v1103 = vunpack.c.l.b16 %v1071
        %v1104 = vunpack.c.l.b16 %v1072
        %v1105 = vunpack.c.l.b16 %v1073
        %v1106 = vunpack.c.l.b16 %v1074
        %v1107 = vunpack.c.l.b16 %v1075
        %v1108 = vunpack.c.l.b16 %v1076
        %v1109 = vunpack.c.l.b16 %v1077
        %v1110 = vunpack.c.l.b16 %v1078
        %v1111 = vunpack.c.l.b16 %v1079
        %v1112 = vpack.c.b16 %v1097, %v1096
        %v1113 = vpack.c.b16 %v1099, %v1098
        %v1114 = vpack.c.b16 %v1101, %v1100
        %v1115 = vpack.c.b16 %v1103, %v1102
        %v1116 = vpack.c.b16 %v1105, %v1104
        %v1117 = vpack.c.b16 %v1107, %v1106
        %v1118 = vpack.c.b16 %v1109, %v1108
        %v1119 = vpack.c.b16 %v1111, %v1110
        %vm1128 = vcmask 64512
        %1129 = vst.msk [vmem:[#allocation3] sm:$0xff] %vm1128, %v1112
        %1130 = vst.msk [vmem:[#allocation3 + $0x8] sm:$0xff] %vm1128, %v1113
        %1131 = vst.msk [vmem:[#allocation3 + $0x10] sm:$0xff] %vm1128, %v1114
        %1132 = vst.msk [vmem:[#allocation3 + $0x18] sm:$0xff] %vm1128, %v1115
        %1133 = vst.msk [vmem:[#allocation3 + $0x20] sm:$0xff] %vm1128, %v1116
        %1134 = vst.msk [vmem:[#allocation3 + $0x28] sm:$0xff] %vm1128, %v1117
        %1135 = vst.msk [vmem:[#allocation3 + $0x30] sm:$0xff] %vm1128, %v1118
        %1136 = vst.msk [vmem:[#allocation3 + $0x38] sm:$0xff] %vm1128, %v1119
        %v1137 = vld [vmem:[#allocation2] sm:$0xf]
        %v1138 = vld [vmem:[#allocation2 + $0x4] sm:$0xf]
        %v1139 = vld [vmem:[#allocation2 + $0x8] sm:$0x1]
        %v1140 = vld [vmem:[#allocation2 + $0xc] sm:$0xf]
        %v1141 = vld [vmem:[#allocation2 + $0x10] sm:$0xf]
        %v1142 = vld [vmem:[#allocation2 + $0x14] sm:$0x1]
        %v1143 = vld [vmem:[#allocation2 + $0x18] sm:$0xf]
        %v1144 = vld [vmem:[#allocation2 + $0x1c] sm:$0xf]
        %v1145 = vld [vmem:[#allocation2 + $0x20] sm:$0x1]
        %v1146 = vld [vmem:[#allocation2 + $0x24] sm:$0xf]
        %v1147 = vld [vmem:[#allocation2 + $0x28] sm:$0xf]
        %v1148 = vld [vmem:[#allocation2 + $0x2c] sm:$0x1]
        %v1149 = vld [vmem:[#allocation2 + $0x30] sm:$0xf]
        %v1150 = vld [vmem:[#allocation2 + $0x34] sm:$0xf]
        %v1151 = vld [vmem:[#allocation2 + $0x38] sm:$0x1]
        %v1152 = vld [vmem:[#allocation2 + $0x3c] sm:$0xf]
        %v1153 = vld [vmem:[#allocation2 + $0x40] sm:$0xf]
        %v1154 = vld [vmem:[#allocation2 + $0x44] sm:$0x1]
        %v1155 = vld [vmem:[#allocation2 + $0x48] sm:$0xf]
        %v1156 = vld [vmem:[#allocation2 + $0x4c] sm:$0xf]
        %v1157 = vld [vmem:[#allocation2 + $0x50] sm:$0x1]
        %v1158 = vld [vmem:[#allocation2 + $0x54] sm:$0xf]
        %v1159 = vld [vmem:[#allocation2 + $0x58] sm:$0xf]
        %v1160 = vld [vmem:[#allocation2 + $0x5c] sm:$0x1]
        %vm1161 = vsmask.f32 3328
        %vm1162 = vsmask.f32 7440
        %vm1163 = vmor %vm1161, %vm1162
        %v1165 = vshrl.u32 %v1137, 16
        %v1167 = vrot.slane %v1165, 4
        %v1168 = vshll.u32 %v1137, 16
        %v1170 = vrot.slane %v1168, 5
        %v1171 = vor.u32 %v1167, %v1170
        %v1172 = vrot.slane %v1171, 4
        %v1174 = vshll.u32 %v1138, 16
        %v1176 = vrot.slane %v1174, 5
        %v1177 = vsel %vm1163, %v1172, %v1176
        %v1178 = vshrl.u32 %v1138, 16
        %v1180 = vrot.slane %v1178, 4
        %v1181 = vor.u32 %v1180, %v1176
        %v1182 = vrot.slane %v1181, 4
        %v1184 = vshll.u32 %v1139, 16
        %v1186 = vrot.slane %v1184, 5
        %v1187 = vsel %vm1163, %v1182, %v1186
        %v1189 = vshrl.u32 %v1140, 16
        %v1191 = vrot.slane %v1189, 4
        %v1192 = vshll.u32 %v1140, 16
        %v1194 = vrot.slane %v1192, 5
        %v1195 = vor.u32 %v1191, %v1194
        %v1196 = vrot.slane %v1195, 4
        %v1198 = vshll.u32 %v1141, 16
        %v1200 = vrot.slane %v1198, 5
        %v1201 = vsel %vm1163, %v1196, %v1200
        %v1202 = vshrl.u32 %v1141, 16
        %v1204 = vrot.slane %v1202, 4
        %v1205 = vor.u32 %v1204, %v1200
        %v1206 = vrot.slane %v1205, 4
        %v1208 = vshll.u32 %v1142, 16
        %v1210 = vrot.slane %v1208, 5
        %v1211 = vsel %vm1163, %v1206, %v1210
        %v1213 = vshrl.u32 %v1143, 16
        %v1215 = vrot.slane %v1213, 4
        %v1216 = vshll.u32 %v1143, 16
        %v1218 = vrot.slane %v1216, 5
        %v1219 = vor.u32 %v1215, %v1218
        %v1220 = vrot.slane %v1219, 4
        %v1222 = vshll.u32 %v1144, 16
        %v1224 = vrot.slane %v1222, 5
        %v1225 = vsel %vm1163, %v1220, %v1224
        %v1226 = vshrl.u32 %v1144, 16
        %v1228 = vrot.slane %v1226, 4
        %v1229 = vor.u32 %v1228, %v1224
        %v1230 = vrot.slane %v1229, 4
        %v1232 = vshll.u32 %v1145, 16
        %v1234 = vrot.slane %v1232, 5
        %v1235 = vsel %vm1163, %v1230, %v1234
        %v1237 = vshrl.u32 %v1146, 16
        %v1239 = vrot.slane %v1237, 4
        %v1240 = vshll.u32 %v1146, 16
        %v1242 = vrot.slane %v1240, 5
        %v1243 = vor.u32 %v1239, %v1242
        %v1244 = vrot.slane %v1243, 4
        %v1246 = vshll.u32 %v1147, 16
        %v1248 = vrot.slane %v1246, 5
        %v1249 = vsel %vm1163, %v1244, %v1248
        %v1250 = vshrl.u32 %v1147, 16
        %v1252 = vrot.slane %v1250, 4
        %v1253 = vor.u32 %v1252, %v1248
        %v1254 = vrot.slane %v1253, 4
        %v1256 = vshll.u32 %v1148, 16
        %v1258 = vrot.slane %v1256, 5
        %v1259 = vsel %vm1163, %v1254, %v1258
        %v1261 = vshrl.u32 %v1149, 16
        %v1263 = vrot.slane %v1261, 4
        %v1264 = vshll.u32 %v1149, 16
        %v1266 = vrot.slane %v1264, 5
        %v1267 = vor.u32 %v1263, %v1266
        %v1268 = vrot.slane %v1267, 4
        %v1270 = vshll.u32 %v1150, 16
        %v1272 = vrot.slane %v1270, 5
        %v1273 = vsel %vm1163, %v1268, %v1272
        %v1274 = vshrl.u32 %v1150, 16
        %v1276 = vrot.slane %v1274, 4
        %v1277 = vor.u32 %v1276, %v1272
        %v1278 = vrot.slane %v1277, 4
        %v1280 = vshll.u32 %v1151, 16
        %v1282 = vrot.slane %v1280, 5
        %v1283 = vsel %vm1163, %v1278, %v1282
        %v1285 = vshrl.u32 %v1152, 16
        %v1287 = vrot.slane %v1285, 4
        %v1288 = vshll.u32 %v1152, 16
        %v1290 = vrot.slane %v1288, 5
        %v1291 = vor.u32 %v1287, %v1290
        %v1292 = vrot.slane %v1291, 4
        %v1294 = vshll.u32 %v1153, 16
        %v1296 = vrot.slane %v1294, 5
        %v1297 = vsel %vm1163, %v1292, %v1296
        %v1298 = vshrl.u32 %v1153, 16
        %v1300 = vrot.slane %v1298, 4
        %v1301 = vor.u32 %v1300, %v1296
        %v1302 = vrot.slane %v1301, 4
        %v1304 = vshll.u32 %v1154, 16
        %v1306 = vrot.slane %v1304, 5
        %v1307 = vsel %vm1163, %v1302, %v1306
        %v1309 = vshrl.u32 %v1155, 16
        %v1311 = vrot.slane %v1309, 4
        %v1312 = vshll.u32 %v1155, 16
        %v1314 = vrot.slane %v1312, 5
        %v1315 = vor.u32 %v1311, %v1314
        %v1316 = vrot.slane %v1315, 4
        %v1318 = vshll.u32 %v1156, 16
        %v1320 = vrot.slane %v1318, 5
        %v1321 = vsel %vm1163, %v1316, %v1320
        %v1322 = vshrl.u32 %v1156, 16
        %v1324 = vrot.slane %v1322, 4
        %v1325 = vor.u32 %v1324, %v1320
        %v1326 = vrot.slane %v1325, 4
        %v1328 = vshll.u32 %v1157, 16
        %v1330 = vrot.slane %v1328, 5
        %v1331 = vsel %vm1163, %v1326, %v1330
        %v1333 = vshrl.u32 %v1158, 16
        %v1335 = vrot.slane %v1333, 4
        %v1336 = vshll.u32 %v1158, 16
        %v1338 = vrot.slane %v1336, 5
        %v1339 = vor.u32 %v1335, %v1338
        %v1340 = vrot.slane %v1339, 4
        %v1342 = vshll.u32 %v1159, 16
        %v1344 = vrot.slane %v1342, 5
        %v1345 = vsel %vm1163, %v1340, %v1344
        %v1346 = vshrl.u32 %v1159, 16
        %v1348 = vrot.slane %v1346, 4
        %v1349 = vor.u32 %v1348, %v1344
        %v1350 = vrot.slane %v1349, 4
        %v1352 = vshll.u32 %v1160, 16
        %v1354 = vrot.slane %v1352, 5
        %v1355 = vsel %vm1163, %v1350, %v1354
        %v1356 = vunpack.c.l.b16 %v1177
        %v1357 = vunpack.c.l.b16 %v1187
        %v1358 = vunpack.c.l.b16 %v1201
        %v1359 = vunpack.c.l.b16 %v1211
        %v1360 = vunpack.c.l.b16 %v1225
        %v1361 = vunpack.c.l.b16 %v1235
        %v1362 = vunpack.c.l.b16 %v1249
        %v1363 = vunpack.c.l.b16 %v1259
        %v1364 = vunpack.c.l.b16 %v1273
        %v1365 = vunpack.c.l.b16 %v1283
        %v1366 = vunpack.c.l.b16 %v1297
        %v1367 = vunpack.c.l.b16 %v1307
        %v1368 = vunpack.c.l.b16 %v1321
        %v1369 = vunpack.c.l.b16 %v1331
        %v1370 = vunpack.c.l.b16 %v1345
        %v1371 = vunpack.c.l.b16 %v1355
        %v1372 = vpack.c.b16 %v1357, %v1356
        %v1373 = vpack.c.b16 %v1359, %v1358
        %v1374 = vpack.c.b16 %v1361, %v1360
        %v1375 = vpack.c.b16 %v1363, %v1362
        %v1376 = vpack.c.b16 %v1365, %v1364
        %v1377 = vpack.c.b16 %v1367, %v1366
        %v1378 = vpack.c.b16 %v1369, %v1368
        %v1379 = vpack.c.b16 %v1371, %v1370
        %1380 = vrot.lane.b32.xlu0 %v1372, 8
        %v1381 = vpop.permute.xlu0 %1380
        %1382 = vrot.lane.b32.xlu0 %v1373, 8
        %v1383 = vpop.permute.xlu0 %1382
        %1384 = vrot.lane.b32.xlu0 %v1374, 8
        %v1385 = vpop.permute.xlu0 %1384
        %1386 = vrot.lane.b32.xlu0 %v1375, 8
        %v1387 = vpop.permute.xlu0 %1386
        %1388 = vrot.lane.b32.xlu0 %v1376, 8
        %v1389 = vpop.permute.xlu0 %1388
        %1390 = vrot.lane.b32.xlu0 %v1377, 8
        %v1391 = vpop.permute.xlu0 %1390
        %1392 = vrot.lane.b32.xlu0 %v1378, 8
        %v1393 = vpop.permute.xlu0 %1392
        %1394 = vrot.lane.b32.xlu0 %v1379, 8
        %v1395 = vpop.permute.xlu0 %1394
        %vm1404 = vcmask 130112
        %1405 = vst.msk [vmem:[#allocation3] sm:$0xff] %vm1404, %v1381
        %1406 = vst.msk [vmem:[#allocation3 + $0x8] sm:$0xff] %vm1404, %v1383
        %1407 = vst.msk [vmem:[#allocation3 + $0x10] sm:$0xff] %vm1404, %v1385
        %1408 = vst.msk [vmem:[#allocation3 + $0x18] sm:$0xff] %vm1404, %v1387
        %1409 = vst.msk [vmem:[#allocation3 + $0x20] sm:$0xff] %vm1404, %v1389
        %1410 = vst.msk [vmem:[#allocation3 + $0x28] sm:$0xff] %vm1404, %v1391
        %1411 = vst.msk [vmem:[#allocation3 + $0x30] sm:$0xff] %vm1404, %v1393
        %1412 = vst.msk [vmem:[#allocation3 + $0x38] sm:$0xff] %vm1404, %v1395
        %v1413 = vld [vmem:[#allocation2] sm:$0xe]
        %v1414 = vld [vmem:[#allocation2 + $0x4] sm:$0xf]
        %v1415 = vld [vmem:[#allocation2 + $0x8] sm:$0x1]
        %v1416 = vld [vmem:[#allocation2 + $0xc] sm:$0xe]
        %v1417 = vld [vmem:[#allocation2 + $0x10] sm:$0xf]
        %v1418 = vld [vmem:[#allocation2 + $0x14] sm:$0x1]
        %v1419 = vld [vmem:[#allocation2 + $0x18] sm:$0xe]
        %v1420 = vld [vmem:[#allocation2 + $0x1c] sm:$0xf]
        %v1421 = vld [vmem:[#allocation2 + $0x20] sm:$0x1]
        %v1422 = vld [vmem:[#allocation2 + $0x24] sm:$0xe]
        %v1423 = vld [vmem:[#allocation2 + $0x28] sm:$0xf]
        %v1424 = vld [vmem:[#allocation2 + $0x2c] sm:$0x1]
        %v1425 = vld [vmem:[#allocation2 + $0x30] sm:$0xe]
        %v1426 = vld [vmem:[#allocation2 + $0x34] sm:$0xf]
        %v1427 = vld [vmem:[#allocation2 + $0x38] sm:$0x1]
        %v1428 = vld [vmem:[#allocation2 + $0x3c] sm:$0xe]
        %v1429 = vld [vmem:[#allocation2 + $0x40] sm:$0xf]
        %v1430 = vld [vmem:[#allocation2 + $0x44] sm:$0x1]
        %v1431 = vld [vmem:[#allocation2 + $0x48] sm:$0xe]
        %v1432 = vld [vmem:[#allocation2 + $0x4c] sm:$0xf]
        %v1433 = vld [vmem:[#allocation2 + $0x50] sm:$0x1]
        %v1434 = vld [vmem:[#allocation2 + $0x54] sm:$0xe]
        %v1435 = vld [vmem:[#allocation2 + $0x58] sm:$0xf]
        %v1436 = vld [vmem:[#allocation2 + $0x5c] sm:$0x1]
        %vm1461 = vcmask 1042432
        %vm1462 = vcmask 1046532
        %vm1463 = vmor %vm1461, %vm1462
        %v1464 = vrot.slane %v1413, 5
        %v1465 = vrot.slane %v1464, 4
        %v1466 = vrot.slane %v1414, 5
        %v1467 = vsel %vm1463, %v1465, %v1466
        %v1468 = vrot.slane %v1466, 4
        %v1469 = vrot.slane %v1415, 5
        %v1470 = vsel %vm1463, %v1468, %v1469
        %v1471 = vrot.slane %v1416, 5
        %v1472 = vrot.slane %v1471, 4
        %v1473 = vrot.slane %v1417, 5
        %v1474 = vsel %vm1463, %v1472, %v1473
        %v1475 = vrot.slane %v1473, 4
        %v1476 = vrot.slane %v1418, 5
        %v1477 = vsel %vm1463, %v1475, %v1476
        %v1478 = vrot.slane %v1419, 5
        %v1479 = vrot.slane %v1478, 4
        %v1480 = vrot.slane %v1420, 5
        %v1481 = vsel %vm1463, %v1479, %v1480
        %v1482 = vrot.slane %v1480, 4
        %v1483 = vrot.slane %v1421, 5
        %v1484 = vsel %vm1463, %v1482, %v1483
        %v1485 = vrot.slane %v1422, 5
        %v1486 = vrot.slane %v1485, 4
        %v1487 = vrot.slane %v1423, 5
        %v1488 = vsel %vm1463, %v1486, %v1487
        %v1489 = vrot.slane %v1487, 4
        %v1490 = vrot.slane %v1424, 5
        %v1491 = vsel %vm1463, %v1489, %v1490
        %v1492 = vrot.slane %v1425, 5
        %v1493 = vrot.slane %v1492, 4
        %v1494 = vrot.slane %v1426, 5
        %v1495 = vsel %vm1463, %v1493, %v1494
        %v1496 = vrot.slane %v1494, 4
        %v1497 = vrot.slane %v1427, 5
        %v1498 = vsel %vm1463, %v1496, %v1497
        %v1499 = vrot.slane %v1428, 5
        %v1500 = vrot.slane %v1499, 4
        %v1501 = vrot.slane %v1429, 5
        %v1502 = vsel %vm1463, %v1500, %v1501
        %v1503 = vrot.slane %v1501, 4
        %v1504 = vrot.slane %v1430, 5
        %v1505 = vsel %vm1463, %v1503, %v1504
        %v1506 = vrot.slane %v1431, 5
        %v1507 = vrot.slane %v1506, 4
        %v1508 = vrot.slane %v1432, 5
        %v1509 = vsel %vm1463, %v1507, %v1508
        %v1510 = vrot.slane %v1508, 4
        %v1511 = vrot.slane %v1433, 5
        %v1512 = vsel %vm1463, %v1510, %v1511
        %v1513 = vrot.slane %v1434, 5
        %v1514 = vrot.slane %v1513, 4
        %v1515 = vrot.slane %v1435, 5
        %v1516 = vsel %vm1463, %v1514, %v1515
        %v1517 = vrot.slane %v1515, 4
        %v1518 = vrot.slane %v1436, 5
        %v1519 = vsel %vm1463, %v1517, %v1518
        %v1520 = vunpack.c.l.b16 %v1467
        %v1521 = vunpack.c.l.b16 %v1470
        %v1522 = vunpack.c.l.b16 %v1474
        %v1523 = vunpack.c.l.b16 %v1477
        %v1524 = vunpack.c.l.b16 %v1481
        %v1525 = vunpack.c.l.b16 %v1484
        %v1526 = vunpack.c.l.b16 %v1488
        %v1527 = vunpack.c.l.b16 %v1491
        %v1528 = vunpack.c.l.b16 %v1495
        %v1529 = vunpack.c.l.b16 %v1498
        %v1530 = vunpack.c.l.b16 %v1502
        %v1531 = vunpack.c.l.b16 %v1505
        %v1532 = vunpack.c.l.b16 %v1509
        %v1533 = vunpack.c.l.b16 %v1512
        %v1534 = vunpack.c.l.b16 %v1516
        %v1535 = vunpack.c.l.b16 %v1519
        %v1536 = vpack.c.b16 %v1521, %v1520
        %v1537 = vpack.c.b16 %v1523, %v1522
        %v1538 = vpack.c.b16 %v1525, %v1524
        %v1539 = vpack.c.b16 %v1527, %v1526
        %v1540 = vpack.c.b16 %v1529, %v1528
        %v1541 = vpack.c.b16 %v1531, %v1530
        %v1542 = vpack.c.b16 %v1533, %v1532
        %v1543 = vpack.c.b16 %v1535, %v1534
        %1544 = vrot.lane.b32.xlu0 %v1536, 16
        %v1545 = vpop.permute.xlu0 %1544
        %1546 = vrot.lane.b32.xlu0 %v1537, 16
        %v1547 = vpop.permute.xlu0 %1546
        %1548 = vrot.lane.b32.xlu0 %v1538, 16
        %v1549 = vpop.permute.xlu0 %1548
        %1550 = vrot.lane.b32.xlu0 %v1539, 16
        %v1551 = vpop.permute.xlu0 %1550
        %1552 = vrot.lane.b32.xlu0 %v1540, 16
        %v1553 = vpop.permute.xlu0 %1552
        %1554 = vrot.lane.b32.xlu0 %v1541, 16
        %v1555 = vpop.permute.xlu0 %1554
        %1556 = vrot.lane.b32.xlu0 %v1542, 16
        %v1557 = vpop.permute.xlu0 %1556
        %1558 = vrot.lane.b32.xlu0 %v1543, 16
        %v1559 = vpop.permute.xlu0 %1558
        %vm1568 = vcmask 195712
        %1569 = vst.msk [vmem:[#allocation3] sm:$0xff] %vm1568, %v1545
        %1570 = vst.msk [vmem:[#allocation3 + $0x8] sm:$0xff] %vm1568, %v1547
        %1571 = vst.msk [vmem:[#allocation3 + $0x10] sm:$0xff] %vm1568, %v1549
        %1572 = vst.msk [vmem:[#allocation3 + $0x18] sm:$0xff] %vm1568, %v1551
        %1573 = vst.msk [vmem:[#allocation3 + $0x20] sm:$0xff] %vm1568, %v1553
        %1574 = vst.msk [vmem:[#allocation3 + $0x28] sm:$0xff] %vm1568, %v1555
        %1575 = vst.msk [vmem:[#allocation3 + $0x30] sm:$0xff] %vm1568, %v1557
        %1576 = vst.msk [vmem:[#allocation3 + $0x38] sm:$0xff] %vm1568, %v1559
        %v1577 = vld [vmem:[%s745] sm:$0xf]
        %v1578 = vld [vmem:[%s745 + $0x4] sm:$0xf]
        %v1579 = vld [vmem:[%s745 + $0xc] sm:$0xf]
        %v1580 = vld [vmem:[%s745 + $0x10] sm:$0xf]
        %v1581 = vld [vmem:[%s745 + $0x18] sm:$0xf]
        %v1582 = vld [vmem:[%s745 + $0x1c] sm:$0xf]
        %v1583 = vld [vmem:[%s745 + $0x24] sm:$0xf]
        %v1584 = vld [vmem:[%s745 + $0x28] sm:$0xf]
        %v1585 = vld [vmem:[%s745 + $0x30] sm:$0xf]
        %v1586 = vld [vmem:[%s745 + $0x34] sm:$0xf]
        %v1587 = vld [vmem:[%s745 + $0x3c] sm:$0xf]
        %v1588 = vld [vmem:[%s745 + $0x40] sm:$0xf]
        %v1589 = vld [vmem:[%s745 + $0x48] sm:$0xf]
        %v1590 = vld [vmem:[%s745 + $0x4c] sm:$0xf]
        %v1591 = vld [vmem:[%s745 + $0x54] sm:$0xf]
        %v1592 = vld [vmem:[%s745 + $0x58] sm:$0xf]
        %v1609 = vunpack.c.l.b16 %v1577
        %v1610 = vunpack.c.l.b16 %v1578
        %v1611 = vunpack.c.l.b16 %v1579
        %v1612 = vunpack.c.l.b16 %v1580
        %v1613 = vunpack.c.l.b16 %v1581
        %v1614 = vunpack.c.l.b16 %v1582
        %v1615 = vunpack.c.l.b16 %v1583
        %v1616 = vunpack.c.l.b16 %v1584
        %v1617 = vunpack.c.l.b16 %v1585
        %v1618 = vunpack.c.l.b16 %v1586
        %v1619 = vunpack.c.l.b16 %v1587
        %v1620 = vunpack.c.l.b16 %v1588
        %v1621 = vunpack.c.l.b16 %v1589
        %v1622 = vunpack.c.l.b16 %v1590
        %v1623 = vunpack.c.l.b16 %v1591
        %v1624 = vunpack.c.l.b16 %v1592
        %v1625 = vpack.c.b16 %v1610, %v1609
        %v1626 = vpack.c.b16 %v1612, %v1611
        %v1627 = vpack.c.b16 %v1614, %v1613
        %v1628 = vpack.c.b16 %v1616, %v1615
        %v1629 = vpack.c.b16 %v1618, %v1617
        %v1630 = vpack.c.b16 %v1620, %v1619
        %v1631 = vpack.c.b16 %v1622, %v1621
        %v1632 = vpack.c.b16 %v1624, %v1623
        %1633 = vrot.lane.b32.xlu0 %v1625, 24
        %v1634 = vpop.permute.xlu0 %1633
        %1635 = vrot.lane.b32.xlu0 %v1626, 24
        %v1636 = vpop.permute.xlu0 %1635
        %1637 = vrot.lane.b32.xlu0 %v1627, 24
        %v1638 = vpop.permute.xlu0 %1637
        %1639 = vrot.lane.b32.xlu0 %v1628, 24
        %v1640 = vpop.permute.xlu0 %1639
        %1641 = vrot.lane.b32.xlu0 %v1629, 24
        %v1642 = vpop.permute.xlu0 %1641
        %1643 = vrot.lane.b32.xlu0 %v1630, 24
        %v1644 = vpop.permute.xlu0 %1643
        %1645 = vrot.lane.b32.xlu0 %v1631, 24
        %v1646 = vpop.permute.xlu0 %1645
        %1647 = vrot.lane.b32.xlu0 %v1632, 24
        %v1648 = vpop.permute.xlu0 %1647
        %vm1657 = vcmask 261312
        %1658 = vst.msk [vmem:[#allocation3] sm:$0xff] %vm1657, %v1634
        %1659 = vst.msk [vmem:[#allocation3 + $0x8] sm:$0xff] %vm1657, %v1636
        %1660 = vst.msk [vmem:[#allocation3 + $0x10] sm:$0xff] %vm1657, %v1638
        %1661 = vst.msk [vmem:[#allocation3 + $0x18] sm:$0xff] %vm1657, %v1640
        %1662 = vst.msk [vmem:[#allocation3 + $0x20] sm:$0xff] %vm1657, %v1642
        %1663 = vst.msk [vmem:[#allocation3 + $0x28] sm:$0xff] %vm1657, %v1644
        %1664 = vst.msk [vmem:[#allocation3 + $0x30] sm:$0xff] %vm1657, %v1646
        %1665 = vst.msk [vmem:[#allocation3 + $0x38] sm:$0xff] %vm1657, %v1648
        %v1666 = vld [vmem:[%s745] sm:$0xf]
        %v1667 = vld [vmem:[%s745 + $0x4] sm:$0xf]
        %v1668 = vld [vmem:[%s745 + $0x8] sm:$0x1]
        %v1669 = vld [vmem:[%s745 + $0xc] sm:$0xf]
        %v1670 = vld [vmem:[%s745 + $0x10] sm:$0xf]
        %v1671 = vld [vmem:[%s745 + $0x14] sm:$0x1]
        %v1672 = vld [vmem:[%s745 + $0x18] sm:$0xf]
        %v1673 = vld [vmem:[%s745 + $0x1c] sm:$0xf]
        %v1674 = vld [vmem:[%s745 + $0x20] sm:$0x1]
        %v1675 = vld [vmem:[%s745 + $0x24] sm:$0xf]
        %v1676 = vld [vmem:[%s745 + $0x28] sm:$0xf]
        %v1677 = vld [vmem:[%s745 + $0x2c] sm:$0x1]
        %v1678 = vld [vmem:[%s745 + $0x30] sm:$0xf]
        %v1679 = vld [vmem:[%s745 + $0x34] sm:$0xf]
        %v1680 = vld [vmem:[%s745 + $0x38] sm:$0x1]
        %v1681 = vld [vmem:[%s745 + $0x3c] sm:$0xf]
        %v1682 = vld [vmem:[%s745 + $0x40] sm:$0xf]
        %v1683 = vld [vmem:[%s745 + $0x44] sm:$0x1]
        %v1684 = vld [vmem:[%s745 + $0x48] sm:$0xf]
        %v1685 = vld [vmem:[%s745 + $0x4c] sm:$0xf]
        %v1686 = vld [vmem:[%s745 + $0x50] sm:$0x1]
        %v1687 = vld [vmem:[%s745 + $0x54] sm:$0xf]
        %v1688 = vld [vmem:[%s745 + $0x58] sm:$0xf]
        %v1689 = vld [vmem:[%s745 + $0x5c] sm:$0x1]
        %v1691 = vshrl.u32 %v1666, 16
        %v1693 = vrot.slane %v1691, 4
        %v1694 = vshll.u32 %v1666, 16
        %v1696 = vrot.slane %v1694, 5
        %v1697 = vor.u32 %v1693, %v1696
        %v1698 = vrot.slane %v1697, 4
        %v1700 = vshll.u32 %v1667, 16
        %v1702 = vrot.slane %v1700, 5
        %v1703 = vsel %vm1163, %v1698, %v1702
        %v1704 = vshrl.u32 %v1667, 16
        %v1706 = vrot.slane %v1704, 4
        %v1707 = vor.u32 %v1706, %v1702
        %v1708 = vrot.slane %v1707, 4
        %v1710 = vshll.u32 %v1668, 16
        %v1712 = vrot.slane %v1710, 5
        %v1713 = vsel %vm1163, %v1708, %v1712
        %v1715 = vshrl.u32 %v1669, 16
        %v1717 = vrot.slane %v1715, 4
        %v1718 = vshll.u32 %v1669, 16
        %v1720 = vrot.slane %v1718, 5
        %v1721 = vor.u32 %v1717, %v1720
        %v1722 = vrot.slane %v1721, 4
        %v1724 = vshll.u32 %v1670, 16
        %v1726 = vrot.slane %v1724, 5
        %v1727 = vsel %vm1163, %v1722, %v1726
        %v1728 = vshrl.u32 %v1670, 16
        %v1730 = vrot.slane %v1728, 4
        %v1731 = vor.u32 %v1730, %v1726
        %v1732 = vrot.slane %v1731, 4
        %v1734 = vshll.u32 %v1671, 16
        %v1736 = vrot.slane %v1734, 5
        %v1737 = vsel %vm1163, %v1732, %v1736
        %v1739 = vshrl.u32 %v1672, 16
        %v1741 = vrot.slane %v1739, 4
        %v1742 = vshll.u32 %v1672, 16
        %v1744 = vrot.slane %v1742, 5
        %v1745 = vor.u32 %v1741, %v1744
        %v1746 = vrot.slane %v1745, 4
        %v1748 = vshll.u32 %v1673, 16
        %v1750 = vrot.slane %v1748, 5
        %v1751 = vsel %vm1163, %v1746, %v1750
        %v1752 = vshrl.u32 %v1673, 16
        %v1754 = vrot.slane %v1752, 4
        %v1755 = vor.u32 %v1754, %v1750
        %v1756 = vrot.slane %v1755, 4
        %v1758 = vshll.u32 %v1674, 16
        %v1760 = vrot.slane %v1758, 5
        %v1761 = vsel %vm1163, %v1756, %v1760
        %v1763 = vshrl.u32 %v1675, 16
        %v1765 = vrot.slane %v1763, 4
        %v1766 = vshll.u32 %v1675, 16
        %v1768 = vrot.slane %v1766, 5
        %v1769 = vor.u32 %v1765, %v1768
        %v1770 = vrot.slane %v1769, 4
        %v1772 = vshll.u32 %v1676, 16
        %v1774 = vrot.slane %v1772, 5
        %v1775 = vsel %vm1163, %v1770, %v1774
        %v1776 = vshrl.u32 %v1676, 16
        %v1778 = vrot.slane %v1776, 4
        %v1779 = vor.u32 %v1778, %v1774
        %v1780 = vrot.slane %v1779, 4
        %v1782 = vshll.u32 %v1677, 16
        %v1784 = vrot.slane %v1782, 5
        %v1785 = vsel %vm1163, %v1780, %v1784
        %v1787 = vshrl.u32 %v1678, 16
        %v1789 = vrot.slane %v1787, 4
        %v1790 = vshll.u32 %v1678, 16
        %v1792 = vrot.slane %v1790, 5
        %v1793 = vor.u32 %v1789, %v1792
        %v1794 = vrot.slane %v1793, 4
        %v1796 = vshll.u32 %v1679, 16
        %v1798 = vrot.slane %v1796, 5
        %v1799 = vsel %vm1163, %v1794, %v1798
        %v1800 = vshrl.u32 %v1679, 16
        %v1802 = vrot.slane %v1800, 4
        %v1803 = vor.u32 %v1802, %v1798
        %v1804 = vrot.slane %v1803, 4
        %v1806 = vshll.u32 %v1680, 16
        %v1808 = vrot.slane %v1806, 5
        %v1809 = vsel %vm1163, %v1804, %v1808
        %v1811 = vshrl.u32 %v1681, 16
        %v1813 = vrot.slane %v1811, 4
        %v1814 = vshll.u32 %v1681, 16
        %v1816 = vrot.slane %v1814, 5
        %v1817 = vor.u32 %v1813, %v1816
        %v1818 = vrot.slane %v1817, 4
        %v1820 = vshll.u32 %v1682, 16
        %v1822 = vrot.slane %v1820, 5
        %v1823 = vsel %vm1163, %v1818, %v1822
        %v1824 = vshrl.u32 %v1682, 16
        %v1826 = vrot.slane %v1824, 4
        %v1827 = vor.u32 %v1826, %v1822
        %v1828 = vrot.slane %v1827, 4
        %v1830 = vshll.u32 %v1683, 16
        %v1832 = vrot.slane %v1830, 5
        %v1833 = vsel %vm1163, %v1828, %v1832
        %v1835 = vshrl.u32 %v1684, 16
        %v1837 = vrot.slane %v1835, 4
        %v1838 = vshll.u32 %v1684, 16
        %v1840 = vrot.slane %v1838, 5
        %v1841 = vor.u32 %v1837, %v1840
        %v1842 = vrot.slane %v1841, 4
        %v1844 = vshll.u32 %v1685, 16
        %v1846 = vrot.slane %v1844, 5
        %v1847 = vsel %vm1163, %v1842, %v1846
        %v1848 = vshrl.u32 %v1685, 16
        %v1850 = vrot.slane %v1848, 4
        %v1851 = vor.u32 %v1850, %v1846
        %v1852 = vrot.slane %v1851, 4
        %v1854 = vshll.u32 %v1686, 16
        %v1856 = vrot.slane %v1854, 5
        %v1857 = vsel %vm1163, %v1852, %v1856
        %v1859 = vshrl.u32 %v1687, 16
        %v1861 = vrot.slane %v1859, 4
        %v1862 = vshll.u32 %v1687, 16
        %v1864 = vrot.slane %v1862, 5
        %v1865 = vor.u32 %v1861, %v1864
        %v1866 = vrot.slane %v1865, 4
        %v1868 = vshll.u32 %v1688, 16
        %v1870 = vrot.slane %v1868, 5
        %v1871 = vsel %vm1163, %v1866, %v1870
        %v1872 = vshrl.u32 %v1688, 16
        %v1874 = vrot.slane %v1872, 4
        %v1875 = vor.u32 %v1874, %v1870
        %v1876 = vrot.slane %v1875, 4
        %v1878 = vshll.u32 %v1689, 16
        %v1880 = vrot.slane %v1878, 5
        %v1881 = vsel %vm1163, %v1876, %v1880
        %v1882 = vunpack.c.l.b16 %v1703
        %v1883 = vunpack.c.l.b16 %v1713
        %v1884 = vunpack.c.l.b16 %v1727
        %v1885 = vunpack.c.l.b16 %v1737
        %v1886 = vunpack.c.l.b16 %v1751
        %v1887 = vunpack.c.l.b16 %v1761
        %v1888 = vunpack.c.l.b16 %v1775
        %v1889 = vunpack.c.l.b16 %v1785
        %v1890 = vunpack.c.l.b16 %v1799
        %v1891 = vunpack.c.l.b16 %v1809
        %v1892 = vunpack.c.l.b16 %v1823
        %v1893 = vunpack.c.l.b16 %v1833
        %v1894 = vunpack.c.l.b16 %v1847
        %v1895 = vunpack.c.l.b16 %v1857
        %v1896 = vunpack.c.l.b16 %v1871
        %v1897 = vunpack.c.l.b16 %v1881
        %v1898 = vpack.c.b16 %v1883, %v1882
        %v1899 = vpack.c.b16 %v1885, %v1884
        %v1900 = vpack.c.b16 %v1887, %v1886
        %v1901 = vpack.c.b16 %v1889, %v1888
        %v1902 = vpack.c.b16 %v1891, %v1890
        %v1903 = vpack.c.b16 %v1893, %v1892
        %v1904 = vpack.c.b16 %v1895, %v1894
        %v1905 = vpack.c.b16 %v1897, %v1896
        %1906 = vrot.lane.b32.xlu0 %v1898, 32
        %v1907 = vpop.permute.xlu0 %1906
        %1908 = vrot.lane.b32.xlu0 %v1899, 32
        %v1909 = vpop.permute.xlu0 %1908
        %1910 = vrot.lane.b32.xlu0 %v1900, 32
        %v1911 = vpop.permute.xlu0 %1910
        %1912 = vrot.lane.b32.xlu0 %v1901, 32
        %v1913 = vpop.permute.xlu0 %1912
        %1914 = vrot.lane.b32.xlu0 %v1902, 32
        %v1915 = vpop.permute.xlu0 %1914
        %1916 = vrot.lane.b32.xlu0 %v1903, 32
        %v1917 = vpop.permute.xlu0 %1916
        %1918 = vrot.lane.b32.xlu0 %v1904, 32
        %v1919 = vpop.permute.xlu0 %1918
        %1920 = vrot.lane.b32.xlu0 %v1905, 32
        %v1921 = vpop.permute.xlu0 %1920
        %vm1930 = vcmask 326912
        %1931 = vst.msk [vmem:[#allocation3] sm:$0xff] %vm1930, %v1907
        %1932 = vst.msk [vmem:[#allocation3 + $0x8] sm:$0xff] %vm1930, %v1909
        %1933 = vst.msk [vmem:[#allocation3 + $0x10] sm:$0xff] %vm1930, %v1911
        %1934 = vst.msk [vmem:[#allocation3 + $0x18] sm:$0xff] %vm1930, %v1913
        %1935 = vst.msk [vmem:[#allocation3 + $0x20] sm:$0xff] %vm1930, %v1915
        %1936 = vst.msk [vmem:[#allocation3 + $0x28] sm:$0xff] %vm1930, %v1917
        %1937 = vst.msk [vmem:[#allocation3 + $0x30] sm:$0xff] %vm1930, %v1919
        %1938 = vst.msk [vmem:[#allocation3 + $0x38] sm:$0xff] %vm1930, %v1921
        %v1939 = vld [vmem:[%s745] sm:$0xe]
        %v1940 = vld [vmem:[%s745 + $0x4] sm:$0xf]
        %v1941 = vld [vmem:[%s745 + $0x8] sm:$0x1]
        %v1942 = vld [vmem:[%s745 + $0xc] sm:$0xe]
        %v1943 = vld [vmem:[%s745 + $0x10] sm:$0xf]
        %v1944 = vld [vmem:[%s745 + $0x14] sm:$0x1]
        %v1945 = vld [vmem:[%s745 + $0x18] sm:$0xe]
        %v1946 = vld [vmem:[%s745 + $0x1c] sm:$0xf]
        %v1947 = vld [vmem:[%s745 + $0x20] sm:$0x1]
        %v1948 = vld [vmem:[%s745 + $0x24] sm:$0xe]
        %v1949 = vld [vmem:[%s745 + $0x28] sm:$0xf]
        %v1950 = vld [vmem:[%s745 + $0x2c] sm:$0x1]
        %v1951 = vld [vmem:[%s745 + $0x30] sm:$0xe]
        %v1952 = vld [vmem:[%s745 + $0x34] sm:$0xf]
        %v1953 = vld [vmem:[%s745 + $0x38] sm:$0x1]
        %v1954 = vld [vmem:[%s745 + $0x3c] sm:$0xe]
        %v1955 = vld [vmem:[%s745 + $0x40] sm:$0xf]
        %v1956 = vld [vmem:[%s745 + $0x44] sm:$0x1]
        %v1957 = vld [vmem:[%s745 + $0x48] sm:$0xe]
        %v1958 = vld [vmem:[%s745 + $0x4c] sm:$0xf]
        %v1959 = vld [vmem:[%s745 + $0x50] sm:$0x1]
        %v1960 = vld [vmem:[%s745 + $0x54] sm:$0xe]
        %v1961 = vld [vmem:[%s745 + $0x58] sm:$0xf]
        %v1962 = vld [vmem:[%s745 + $0x5c] sm:$0x1]
        %v1987 = vrot.slane %v1939, 5
        %v1988 = vrot.slane %v1987, 4
        %v1989 = vrot.slane %v1940, 5
        %v1990 = vsel %vm1463, %v1988, %v1989
        %v1991 = vrot.slane %v1989, 4
        %v1992 = vrot.slane %v1941, 5
        %v1993 = vsel %vm1463, %v1991, %v1992
        %v1994 = vrot.slane %v1942, 5
        %v1995 = vrot.slane %v1994, 4
        %v1996 = vrot.slane %v1943, 5
        %v1997 = vsel %vm1463, %v1995, %v1996
        %v1998 = vrot.slane %v1996, 4
        %v1999 = vrot.slane %v1944, 5
        %v2000 = vsel %vm1463, %v1998, %v1999
        %v2001 = vrot.slane %v1945, 5
        %v2002 = vrot.slane %v2001, 4
        %v2003 = vrot.slane %v1946, 5
        %v2004 = vsel %vm1463, %v2002, %v2003
        %v2005 = vrot.slane %v2003, 4
        %v2006 = vrot.slane %v1947, 5
        %v2007 = vsel %vm1463, %v2005, %v2006
        %v2008 = vrot.slane %v1948, 5
        %v2009 = vrot.slane %v2008, 4
        %v2010 = vrot.slane %v1949, 5
        %v2011 = vsel %vm1463, %v2009, %v2010
        %v2012 = vrot.slane %v2010, 4
        %v2013 = vrot.slane %v1950, 5
        %v2014 = vsel %vm1463, %v2012, %v2013
        %v2015 = vrot.slane %v1951, 5
        %v2016 = vrot.slane %v2015, 4
        %v2017 = vrot.slane %v1952, 5
        %v2018 = vsel %vm1463, %v2016, %v2017
        %v2019 = vrot.slane %v2017, 4
        %v2020 = vrot.slane %v1953, 5
        %v2021 = vsel %vm1463, %v2019, %v2020
        %v2022 = vrot.slane %v1954, 5
        %v2023 = vrot.slane %v2022, 4
        %v2024 = vrot.slane %v1955, 5
        %v2025 = vsel %vm1463, %v2023, %v2024
        %v2026 = vrot.slane %v2024, 4
        %v2027 = vrot.slane %v1956, 5
        %v2028 = vsel %vm1463, %v2026, %v2027
        %v2029 = vrot.slane %v1957, 5
        %v2030 = vrot.slane %v2029, 4
        %v2031 = vrot.slane %v1958, 5
        %v2032 = vsel %vm1463, %v2030, %v2031
        %v2033 = vrot.slane %v2031, 4
        %v2034 = vrot.slane %v1959, 5
        %v2035 = vsel %vm1463, %v2033, %v2034
        %v2036 = vrot.slane %v1960, 5
        %v2037 = vrot.slane %v2036, 4
        %v2038 = vrot.slane %v1961, 5
        %v2039 = vsel %vm1463, %v2037, %v2038
        %v2040 = vrot.slane %v2038, 4
        %v2041 = vrot.slane %v1962, 5
        %v2042 = vsel %vm1463, %v2040, %v2041
        %v2043 = vunpack.c.l.b16 %v1990
        %v2044 = vunpack.c.l.b16 %v1993
        %v2045 = vunpack.c.l.b16 %v1997
        %v2046 = vunpack.c.l.b16 %v2000
        %v2047 = vunpack.c.l.b16 %v2004
        %v2048 = vunpack.c.l.b16 %v2007
        %v2049 = vunpack.c.l.b16 %v2011
        %v2050 = vunpack.c.l.b16 %v2014
        %v2051 = vunpack.c.l.b16 %v2018
        %v2052 = vunpack.c.l.b16 %v2021
        %v2053 = vunpack.c.l.b16 %v2025
        %v2054 = vunpack.c.l.b16 %v2028
        %v2055 = vunpack.c.l.b16 %v2032
        %v2056 = vunpack.c.l.b16 %v2035
        %v2057 = vunpack.c.l.b16 %v2039
        %v2058 = vunpack.c.l.b16 %v2042
        %v2059 = vpack.c.b16 %v2044, %v2043
        %v2060 = vpack.c.b16 %v2046, %v2045
        %v2061 = vpack.c.b16 %v2048, %v2047
        %v2062 = vpack.c.b16 %v2050, %v2049
        %v2063 = vpack.c.b16 %v2052, %v2051
        %v2064 = vpack.c.b16 %v2054, %v2053
        %v2065 = vpack.c.b16 %v2056, %v2055
        %v2066 = vpack.c.b16 %v2058, %v2057
        %2067 = vrot.lane.b32.xlu0 %v2059, 40
        %v2068 = vpop.permute.xlu0 %2067
        %2069 = vrot.lane.b32.xlu0 %v2060, 40
        %v2070 = vpop.permute.xlu0 %2069
        %2071 = vrot.lane.b32.xlu0 %v2061, 40
        %v2072 = vpop.permute.xlu0 %2071
        %2073 = vrot.lane.b32.xlu0 %v2062, 40
        %v2074 = vpop.permute.xlu0 %2073
        %2075 = vrot.lane.b32.xlu0 %v2063, 40
        %v2076 = vpop.permute.xlu0 %2075
        %2077 = vrot.lane.b32.xlu0 %v2064, 40
        %v2078 = vpop.permute.xlu0 %2077
        %2079 = vrot.lane.b32.xlu0 %v2065, 40
        %v2080 = vpop.permute.xlu0 %2079
        %2081 = vrot.lane.b32.xlu0 %v2066, 40
        %v2082 = vpop.permute.xlu0 %2081
        %vm2091 = vcmask 392512
        %2092 = vst.msk [vmem:[#allocation3] sm:$0xff] %vm2091, %v2068
        %2093 = vst.msk [vmem:[#allocation3 + $0x8] sm:$0xff] %vm2091, %v2070
        %2094 = vst.msk [vmem:[#allocation3 + $0x10] sm:$0xff] %vm2091, %v2072
        %2095 = vst.msk [vmem:[#allocation3 + $0x18] sm:$0xff] %vm2091, %v2074
        %2096 = vst.msk [vmem:[#allocation3 + $0x20] sm:$0xff] %vm2091, %v2076
        %2097 = vst.msk [vmem:[#allocation3 + $0x28] sm:$0xff] %vm2091, %v2078
        %2098 = vst.msk [vmem:[#allocation3 + $0x30] sm:$0xff] %vm2091, %v2080
        %2099 = vst.msk [vmem:[#allocation3 + $0x38] sm:$0xff] %vm2091, %v2082
        %s2100 = scalar_lea.vmem [#allocation2], 24
        %v2101 = vld [vmem:[%s2100] sm:$0xf]
        %v2102 = vld [vmem:[%s2100 + $0x4] sm:$0xf]
        %v2103 = vld [vmem:[%s2100 + $0xc] sm:$0xf]
        %v2104 = vld [vmem:[%s2100 + $0x10] sm:$0xf]
        %v2105 = vld [vmem:[%s2100 + $0x18] sm:$0xf]
        %v2106 = vld [vmem:[%s2100 + $0x1c] sm:$0xf]
        %v2107 = vld [vmem:[%s2100 + $0x24] sm:$0xf]
        %v2108 = vld [vmem:[%s2100 + $0x28] sm:$0xf]
        %v2109 = vld [vmem:[%s2100 + $0x30] sm:$0xf]
        %v2110 = vld [vmem:[%s2100 + $0x34] sm:$0xf]
        %v2111 = vld [vmem:[%s2100 + $0x3c] sm:$0xf]
        %v2112 = vld [vmem:[%s2100 + $0x40] sm:$0xf]
        %v2113 = vld [vmem:[%s2100 + $0x48] sm:$0xf]
        %v2114 = vld [vmem:[%s2100 + $0x4c] sm:$0xf]
        %v2115 = vld [vmem:[%s2100 + $0x54] sm:$0xf]
        %v2116 = vld [vmem:[%s2100 + $0x58] sm:$0xf]
        %v2133 = vunpack.c.l.b16 %v2101
        %v2134 = vunpack.c.l.b16 %v2102
        %v2135 = vunpack.c.l.b16 %v2103
        %v2136 = vunpack.c.l.b16 %v2104
        %v2137 = vunpack.c.l.b16 %v2105
        %v2138 = vunpack.c.l.b16 %v2106
        %v2139 = vunpack.c.l.b16 %v2107
        %v2140 = vunpack.c.l.b16 %v2108
        %v2141 = vunpack.c.l.b16 %v2109
        %v2142 = vunpack.c.l.b16 %v2110
        %v2143 = vunpack.c.l.b16 %v2111
        %v2144 = vunpack.c.l.b16 %v2112
        %v2145 = vunpack.c.l.b16 %v2113
        %v2146 = vunpack.c.l.b16 %v2114
        %v2147 = vunpack.c.l.b16 %v2115
        %v2148 = vunpack.c.l.b16 %v2116
        %v2149 = vpack.c.b16 %v2134, %v2133
        %v2150 = vpack.c.b16 %v2136, %v2135
        %v2151 = vpack.c.b16 %v2138, %v2137
        %v2152 = vpack.c.b16 %v2140, %v2139
        %v2153 = vpack.c.b16 %v2142, %v2141
        %v2154 = vpack.c.b16 %v2144, %v2143
        %v2155 = vpack.c.b16 %v2146, %v2145
        %v2156 = vpack.c.b16 %v2148, %v2147
        %2157 = vrot.lane.b32.xlu0 %v2149, 48
        %v2158 = vpop.permute.xlu0 %2157
        %2159 = vrot.lane.b32.xlu0 %v2150, 48
        %v2160 = vpop.permute.xlu0 %2159
        %2161 = vrot.lane.b32.xlu0 %v2151, 48
        %v2162 = vpop.permute.xlu0 %2161
        %2163 = vrot.lane.b32.xlu0 %v2152, 48
        %v2164 = vpop.permute.xlu0 %2163
        %2165 = vrot.lane.b32.xlu0 %v2153, 48
        %v2166 = vpop.permute.xlu0 %2165
        %2167 = vrot.lane.b32.xlu0 %v2154, 48
        %v2168 = vpop.permute.xlu0 %2167
        %2169 = vrot.lane.b32.xlu0 %v2155, 48
        %v2170 = vpop.permute.xlu0 %2169
        %2171 = vrot.lane.b32.xlu0 %v2156, 48
        %v2172 = vpop.permute.xlu0 %2171
        %vm2181 = vcmask 458112
        %2182 = vst.msk [vmem:[#allocation3] sm:$0xff] %vm2181, %v2158
        %2183 = vst.msk [vmem:[#allocation3 + $0x8] sm:$0xff] %vm2181, %v2160
        %2184 = vst.msk [vmem:[#allocation3 + $0x10] sm:$0xff] %vm2181, %v2162
        %2185 = vst.msk [vmem:[#allocation3 + $0x18] sm:$0xff] %vm2181, %v2164
        %2186 = vst.msk [vmem:[#allocation3 + $0x20] sm:$0xff] %vm2181, %v2166
        %2187 = vst.msk [vmem:[#allocation3 + $0x28] sm:$0xff] %vm2181, %v2168
        %2188 = vst.msk [vmem:[#allocation3 + $0x30] sm:$0xff] %vm2181, %v2170
        %2189 = vst.msk [vmem:[#allocation3 + $0x38] sm:$0xff] %vm2181, %v2172
        %v2190 = vld [vmem:[%s2100] sm:$0xf]
        %v2191 = vld [vmem:[%s2100 + $0x4] sm:$0xf]
        %v2192 = vld [vmem:[%s2100 + $0x8] sm:$0x1]
        %v2193 = vld [vmem:[%s2100 + $0xc] sm:$0xf]
        %v2194 = vld [vmem:[%s2100 + $0x10] sm:$0xf]
        %v2195 = vld [vmem:[%s2100 + $0x14] sm:$0x1]
        %v2196 = vld [vmem:[%s2100 + $0x18] sm:$0xf]
        %v2197 = vld [vmem:[%s2100 + $0x1c] sm:$0xf]
        %v2198 = vld [vmem:[%s2100 + $0x20] sm:$0x1]
        %v2199 = vld [vmem:[%s2100 + $0x24] sm:$0xf]
        %v2200 = vld [vmem:[%s2100 + $0x28] sm:$0xf]
        %v2201 = vld [vmem:[%s2100 + $0x2c] sm:$0x1]
        %v2202 = vld [vmem:[%s2100 + $0x30] sm:$0xf]
        %v2203 = vld [vmem:[%s2100 + $0x34] sm:$0xf]
        %v2204 = vld [vmem:[%s2100 + $0x38] sm:$0x1]
        %v2205 = vld [vmem:[%s2100 + $0x3c] sm:$0xf]
        %v2206 = vld [vmem:[%s2100 + $0x40] sm:$0xf]
        %v2207 = vld [vmem:[%s2100 + $0x44] sm:$0x1]
        %v2208 = vld [vmem:[%s2100 + $0x48] sm:$0xf]
        %v2209 = vld [vmem:[%s2100 + $0x4c] sm:$0xf]
        %v2210 = vld [vmem:[%s2100 + $0x50] sm:$0x1]
        %v2211 = vld [vmem:[%s2100 + $0x54] sm:$0xf]
        %v2212 = vld [vmem:[%s2100 + $0x58] sm:$0xf]
        %v2213 = vld [vmem:[%s2100 + $0x5c] sm:$0x1]
        %v2215 = vshrl.u32 %v2190, 16
        %v2217 = vrot.slane %v2215, 4
        %v2218 = vshll.u32 %v2190, 16
        %v2220 = vrot.slane %v2218, 5
        %v2221 = vor.u32 %v2217, %v2220
        %v2222 = vrot.slane %v2221, 4
        %v2224 = vshll.u32 %v2191, 16
        %v2226 = vrot.slane %v2224, 5
        %v2227 = vsel %vm1163, %v2222, %v2226
        %v2228 = vshrl.u32 %v2191, 16
        %v2230 = vrot.slane %v2228, 4
        %v2231 = vor.u32 %v2230, %v2226
        %v2232 = vrot.slane %v2231, 4
        %v2234 = vshll.u32 %v2192, 16
        %v2236 = vrot.slane %v2234, 5
        %v2237 = vsel %vm1163, %v2232, %v2236
        %v2239 = vshrl.u32 %v2193, 16
        %v2241 = vrot.slane %v2239, 4
        %v2242 = vshll.u32 %v2193, 16
        %v2244 = vrot.slane %v2242, 5
        %v2245 = vor.u32 %v2241, %v2244
        %v2246 = vrot.slane %v2245, 4
        %v2248 = vshll.u32 %v2194, 16
        %v2250 = vrot.slane %v2248, 5
        %v2251 = vsel %vm1163, %v2246, %v2250
        %v2252 = vshrl.u32 %v2194, 16
        %v2254 = vrot.slane %v2252, 4
        %v2255 = vor.u32 %v2254, %v2250
        %v2256 = vrot.slane %v2255, 4
        %v2258 = vshll.u32 %v2195, 16
        %v2260 = vrot.slane %v2258, 5
        %v2261 = vsel %vm1163, %v2256, %v2260
        %v2263 = vshrl.u32 %v2196, 16
        %v2265 = vrot.slane %v2263, 4
        %v2266 = vshll.u32 %v2196, 16
        %v2268 = vrot.slane %v2266, 5
        %v2269 = vor.u32 %v2265, %v2268
        %v2270 = vrot.slane %v2269, 4
        %v2272 = vshll.u32 %v2197, 16
        %v2274 = vrot.slane %v2272, 5
        %v2275 = vsel %vm1163, %v2270, %v2274
        %v2276 = vshrl.u32 %v2197, 16
        %v2278 = vrot.slane %v2276, 4
        %v2279 = vor.u32 %v2278, %v2274
        %v2280 = vrot.slane %v2279, 4
        %v2282 = vshll.u32 %v2198, 16
        %v2284 = vrot.slane %v2282, 5
        %v2285 = vsel %vm1163, %v2280, %v2284
        %v2287 = vshrl.u32 %v2199, 16
        %v2289 = vrot.slane %v2287, 4
        %v2290 = vshll.u32 %v2199, 16
        %v2292 = vrot.slane %v2290, 5
        %v2293 = vor.u32 %v2289, %v2292
        %v2294 = vrot.slane %v2293, 4
        %v2296 = vshll.u32 %v2200, 16
        %v2298 = vrot.slane %v2296, 5
        %v2299 = vsel %vm1163, %v2294, %v2298
        %v2300 = vshrl.u32 %v2200, 16
        %v2302 = vrot.slane %v2300, 4
        %v2303 = vor.u32 %v2302, %v2298
        %v2304 = vrot.slane %v2303, 4
        %v2306 = vshll.u32 %v2201, 16
        %v2308 = vrot.slane %v2306, 5
        %v2309 = vsel %vm1163, %v2304, %v2308
        %v2311 = vshrl.u32 %v2202, 16
        %v2313 = vrot.slane %v2311, 4
        %v2314 = vshll.u32 %v2202, 16
        %v2316 = vrot.slane %v2314, 5
        %v2317 = vor.u32 %v2313, %v2316
        %v2318 = vrot.slane %v2317, 4
        %v2320 = vshll.u32 %v2203, 16
        %v2322 = vrot.slane %v2320, 5
        %v2323 = vsel %vm1163, %v2318, %v2322
        %v2324 = vshrl.u32 %v2203, 16
        %v2326 = vrot.slane %v2324, 4
        %v2327 = vor.u32 %v2326, %v2322
        %v2328 = vrot.slane %v2327, 4
        %v2330 = vshll.u32 %v2204, 16
        %v2332 = vrot.slane %v2330, 5
        %v2333 = vsel %vm1163, %v2328, %v2332
        %v2335 = vshrl.u32 %v2205, 16
        %v2337 = vrot.slane %v2335, 4
        %v2338 = vshll.u32 %v2205, 16
        %v2340 = vrot.slane %v2338, 5
        %v2341 = vor.u32 %v2337, %v2340
        %v2342 = vrot.slane %v2341, 4
        %v2344 = vshll.u32 %v2206, 16
        %v2346 = vrot.slane %v2344, 5
        %v2347 = vsel %vm1163, %v2342, %v2346
        %v2348 = vshrl.u32 %v2206, 16
        %v2350 = vrot.slane %v2348, 4
        %v2351 = vor.u32 %v2350, %v2346
        %v2352 = vrot.slane %v2351, 4
        %v2354 = vshll.u32 %v2207, 16
        %v2356 = vrot.slane %v2354, 5
        %v2357 = vsel %vm1163, %v2352, %v2356
        %v2359 = vshrl.u32 %v2208, 16
        %v2361 = vrot.slane %v2359, 4
        %v2362 = vshll.u32 %v2208, 16
        %v2364 = vrot.slane %v2362, 5
        %v2365 = vor.u32 %v2361, %v2364
        %v2366 = vrot.slane %v2365, 4
        %v2368 = vshll.u32 %v2209, 16
        %v2370 = vrot.slane %v2368, 5
        %v2371 = vsel %vm1163, %v2366, %v2370
        %v2372 = vshrl.u32 %v2209, 16
        %v2374 = vrot.slane %v2372, 4
        %v2375 = vor.u32 %v2374, %v2370
        %v2376 = vrot.slane %v2375, 4
        %v2378 = vshll.u32 %v2210, 16
        %v2380 = vrot.slane %v2378, 5
        %v2381 = vsel %vm1163, %v2376, %v2380
        %v2383 = vshrl.u32 %v2211, 16
        %v2385 = vrot.slane %v2383, 4
        %v2386 = vshll.u32 %v2211, 16
        %v2388 = vrot.slane %v2386, 5
        %v2389 = vor.u32 %v2385, %v2388
        %v2390 = vrot.slane %v2389, 4
        %v2392 = vshll.u32 %v2212, 16
        %v2394 = vrot.slane %v2392, 5
        %v2395 = vsel %vm1163, %v2390, %v2394
        %v2396 = vshrl.u32 %v2212, 16
        %v2398 = vrot.slane %v2396, 4
        %v2399 = vor.u32 %v2398, %v2394
        %v2400 = vrot.slane %v2399, 4
        %v2402 = vshll.u32 %v2213, 16
        %v2404 = vrot.slane %v2402, 5
        %v2405 = vsel %vm1163, %v2400, %v2404
        %v2406 = vunpack.c.l.b16 %v2227
        %v2407 = vunpack.c.l.b16 %v2237
        %v2408 = vunpack.c.l.b16 %v2251
        %v2409 = vunpack.c.l.b16 %v2261
        %v2410 = vunpack.c.l.b16 %v2275
        %v2411 = vunpack.c.l.b16 %v2285
        %v2412 = vunpack.c.l.b16 %v2299
        %v2413 = vunpack.c.l.b16 %v2309
        %v2414 = vunpack.c.l.b16 %v2323
        %v2415 = vunpack.c.l.b16 %v2333
        %v2416 = vunpack.c.l.b16 %v2347
        %v2417 = vunpack.c.l.b16 %v2357
        %v2418 = vunpack.c.l.b16 %v2371
        %v2419 = vunpack.c.l.b16 %v2381
        %v2420 = vunpack.c.l.b16 %v2395
        %v2421 = vunpack.c.l.b16 %v2405
        %v2422 = vpack.c.b16 %v2407, %v2406
        %v2423 = vpack.c.b16 %v2409, %v2408
        %v2424 = vpack.c.b16 %v2411, %v2410
        %v2425 = vpack.c.b16 %v2413, %v2412
        %v2426 = vpack.c.b16 %v2415, %v2414
        %v2427 = vpack.c.b16 %v2417, %v2416
        %v2428 = vpack.c.b16 %v2419, %v2418
        %v2429 = vpack.c.b16 %v2421, %v2420
        %2430 = vrot.lane.b32.xlu0 %v2422, 56
        %v2431 = vpop.permute.xlu0 %2430
        %2432 = vrot.lane.b32.xlu0 %v2423, 56
        %v2433 = vpop.permute.xlu0 %2432
        %2434 = vrot.lane.b32.xlu0 %v2424, 56
        %v2435 = vpop.permute.xlu0 %2434
        %2436 = vrot.lane.b32.xlu0 %v2425, 56
        %v2437 = vpop.permute.xlu0 %2436
        %2438 = vrot.lane.b32.xlu0 %v2426, 56
        %v2439 = vpop.permute.xlu0 %2438
        %2440 = vrot.lane.b32.xlu0 %v2427, 56
        %v2441 = vpop.permute.xlu0 %2440
        %2442 = vrot.lane.b32.xlu0 %v2428, 56
        %v2443 = vpop.permute.xlu0 %2442
        %2444 = vrot.lane.b32.xlu0 %v2429, 56
        %v2445 = vpop.permute.xlu0 %2444
        %vm2454 = vcmask 523712
        %2455 = vst.msk [vmem:[#allocation3] sm:$0xff] %vm2454, %v2431
        %2456 = vst.msk [vmem:[#allocation3 + $0x8] sm:$0xff] %vm2454, %v2433
        %2457 = vst.msk [vmem:[#allocation3 + $0x10] sm:$0xff] %vm2454, %v2435
        %2458 = vst.msk [vmem:[#allocation3 + $0x18] sm:$0xff] %vm2454, %v2437
        %2459 = vst.msk [vmem:[#allocation3 + $0x20] sm:$0xff] %vm2454, %v2439
        %2460 = vst.msk [vmem:[#allocation3 + $0x28] sm:$0xff] %vm2454, %v2441
        %2461 = vst.msk [vmem:[#allocation3 + $0x30] sm:$0xff] %vm2454, %v2443
        %2462 = vst.msk [vmem:[#allocation3 + $0x38] sm:$0xff] %vm2454, %v2445
        %v2463 = vld [vmem:[%s2100] sm:$0xe]
        %v2464 = vld [vmem:[%s2100 + $0x4] sm:$0xf]
        %v2465 = vld [vmem:[%s2100 + $0x8] sm:$0x1]
        %v2466 = vld [vmem:[%s2100 + $0xc] sm:$0xe]
        %v2467 = vld [vmem:[%s2100 + $0x10] sm:$0xf]
        %v2468 = vld [vmem:[%s2100 + $0x14] sm:$0x1]
        %v2469 = vld [vmem:[%s2100 + $0x18] sm:$0xe]
        %v2470 = vld [vmem:[%s2100 + $0x1c] sm:$0xf]
        %v2471 = vld [vmem:[%s2100 + $0x20] sm:$0x1]
        %v2472 = vld [vmem:[%s2100 + $0x24] sm:$0xe]
        %v2473 = vld [vmem:[%s2100 + $0x28] sm:$0xf]
        %v2474 = vld [vmem:[%s2100 + $0x2c] sm:$0x1]
        %v2475 = vld [vmem:[%s2100 + $0x30] sm:$0xe]
        %v2476 = vld [vmem:[%s2100 + $0x34] sm:$0xf]
        %v2477 = vld [vmem:[%s2100 + $0x38] sm:$0x1]
        %v2478 = vld [vmem:[%s2100 + $0x3c] sm:$0xe]
        %v2479 = vld [vmem:[%s2100 + $0x40] sm:$0xf]
        %v2480 = vld [vmem:[%s2100 + $0x44] sm:$0x1]
        %v2481 = vld [vmem:[%s2100 + $0x48] sm:$0xe]
        %v2482 = vld [vmem:[%s2100 + $0x4c] sm:$0xf]
        %v2483 = vld [vmem:[%s2100 + $0x50] sm:$0x1]
        %v2484 = vld [vmem:[%s2100 + $0x54] sm:$0xe]
        %v2485 = vld [vmem:[%s2100 + $0x58] sm:$0xf]
        %v2486 = vld [vmem:[%s2100 + $0x5c] sm:$0x1]
        %v2511 = vrot.slane %v2463, 5
        %v2512 = vrot.slane %v2511, 4
        %v2513 = vrot.slane %v2464, 5
        %v2514 = vsel %vm1463, %v2512, %v2513
        %v2515 = vrot.slane %v2513, 4
        %v2516 = vrot.slane %v2465, 5
        %v2517 = vsel %vm1463, %v2515, %v2516
        %v2518 = vrot.slane %v2466, 5
        %v2519 = vrot.slane %v2518, 4
        %v2520 = vrot.slane %v2467, 5
        %v2521 = vsel %vm1463, %v2519, %v2520
        %v2522 = vrot.slane %v2520, 4
        %v2523 = vrot.slane %v2468, 5
        %v2524 = vsel %vm1463, %v2522, %v2523
        %v2525 = vrot.slane %v2469, 5
        %v2526 = vrot.slane %v2525, 4
        %v2527 = vrot.slane %v2470, 5
        %v2528 = vsel %vm1463, %v2526, %v2527
        %v2529 = vrot.slane %v2527, 4
        %v2530 = vrot.slane %v2471, 5
        %v2531 = vsel %vm1463, %v2529, %v2530
        %v2532 = vrot.slane %v2472, 5
        %v2533 = vrot.slane %v2532, 4
        %v2534 = vrot.slane %v2473, 5
        %v2535 = vsel %vm1463, %v2533, %v2534
        %v2536 = vrot.slane %v2534, 4
        %v2537 = vrot.slane %v2474, 5
        %v2538 = vsel %vm1463, %v2536, %v2537
        %v2539 = vrot.slane %v2475, 5
        %v2540 = vrot.slane %v2539, 4
        %v2541 = vrot.slane %v2476, 5
        %v2542 = vsel %vm1463, %v2540, %v2541
        %v2543 = vrot.slane %v2541, 4
        %v2544 = vrot.slane %v2477, 5
        %v2545 = vsel %vm1463, %v2543, %v2544
        %v2546 = vrot.slane %v2478, 5
        %v2547 = vrot.slane %v2546, 4
        %v2548 = vrot.slane %v2479, 5
        %v2549 = vsel %vm1463, %v2547, %v2548
        %v2550 = vrot.slane %v2548, 4
        %v2551 = vrot.slane %v2480, 5
        %v2552 = vsel %vm1463, %v2550, %v2551
        %v2553 = vrot.slane %v2481, 5
        %v2554 = vrot.slane %v2553, 4
        %v2555 = vrot.slane %v2482, 5
        %v2556 = vsel %vm1463, %v2554, %v2555
        %v2557 = vrot.slane %v2555, 4
        %v2558 = vrot.slane %v2483, 5
        %v2559 = vsel %vm1463, %v2557, %v2558
        %v2560 = vrot.slane %v2484, 5
        %v2561 = vrot.slane %v2560, 4
        %v2562 = vrot.slane %v2485, 5
        %v2563 = vsel %vm1463, %v2561, %v2562
        %v2564 = vrot.slane %v2562, 4
        %v2565 = vrot.slane %v2486, 5
        %v2566 = vsel %vm1463, %v2564, %v2565
        %v2567 = vunpack.c.l.b16 %v2514
        %v2568 = vunpack.c.l.b16 %v2517
        %v2569 = vunpack.c.l.b16 %v2521
        %v2570 = vunpack.c.l.b16 %v2524
        %v2571 = vunpack.c.l.b16 %v2528
        %v2572 = vunpack.c.l.b16 %v2531
        %v2573 = vunpack.c.l.b16 %v2535
        %v2574 = vunpack.c.l.b16 %v2538
        %v2575 = vunpack.c.l.b16 %v2542
        %v2576 = vunpack.c.l.b16 %v2545
        %v2577 = vunpack.c.l.b16 %v2549
        %v2578 = vunpack.c.l.b16 %v2552
        %v2579 = vunpack.c.l.b16 %v2556
        %v2580 = vunpack.c.l.b16 %v2559
        %v2581 = vunpack.c.l.b16 %v2563
        %v2582 = vunpack.c.l.b16 %v2566
        %v2583 = vpack.c.b16 %v2568, %v2567
        %v2584 = vpack.c.b16 %v2570, %v2569
        %v2585 = vpack.c.b16 %v2572, %v2571
        %v2586 = vpack.c.b16 %v2574, %v2573
        %v2587 = vpack.c.b16 %v2576, %v2575
        %v2588 = vpack.c.b16 %v2578, %v2577
        %v2589 = vpack.c.b16 %v2580, %v2579
        %v2590 = vpack.c.b16 %v2582, %v2581
        %2591 = vrot.lane.b32.xlu0 %v2583, 64
        %v2592 = vpop.permute.xlu0 %2591
        %2593 = vrot.lane.b32.xlu0 %v2584, 64
        %v2594 = vpop.permute.xlu0 %2593
        %2595 = vrot.lane.b32.xlu0 %v2585, 64
        %v2596 = vpop.permute.xlu0 %2595
        %2597 = vrot.lane.b32.xlu0 %v2586, 64
        %v2598 = vpop.permute.xlu0 %2597
        %2599 = vrot.lane.b32.xlu0 %v2587, 64
        %v2600 = vpop.permute.xlu0 %2599
        %2601 = vrot.lane.b32.xlu0 %v2588, 64
        %v2602 = vpop.permute.xlu0 %2601
        %2603 = vrot.lane.b32.xlu0 %v2589, 64
        %v2604 = vpop.permute.xlu0 %2603
        %2605 = vrot.lane.b32.xlu0 %v2590, 64
        %v2606 = vpop.permute.xlu0 %2605
        %vm2615 = vcmask 589312
        %2616 = vst.msk [vmem:[#allocation3] sm:$0xff] %vm2615, %v2592
        %2617 = vst.msk [vmem:[#allocation3 + $0x8] sm:$0xff] %vm2615, %v2594
        %2618 = vst.msk [vmem:[#allocation3 + $0x10] sm:$0xff] %vm2615, %v2596
        %2619 = vst.msk [vmem:[#allocation3 + $0x18] sm:$0xff] %vm2615, %v2598
        %2620 = vst.msk [vmem:[#allocation3 + $0x20] sm:$0xff] %vm2615, %v2600
        %2621 = vst.msk [vmem:[#allocation3 + $0x28] sm:$0xff] %vm2615, %v2602
        %2622 = vst.msk [vmem:[#allocation3 + $0x30] sm:$0xff] %vm2615, %v2604
        %2623 = vst.msk [vmem:[#allocation3 + $0x38] sm:$0xff] %vm2615, %v2606
        %v2624 = vld [vmem:[#allocation3] sm:$0xff]
        %v2625 = vld [vmem:[#allocation3 + $0x8] sm:$0xff]
        %v2626 = vld [vmem:[#allocation3 + $0x10] sm:$0xff]
        %v2627 = vld [vmem:[#allocation3 + $0x18] sm:$0xff]
        %v2628 = vld [vmem:[#allocation3 + $0x20] sm:$0xff]
        %v2629 = vld [vmem:[#allocation3 + $0x28] sm:$0xff]
        %v2630 = vld [vmem:[#allocation3 + $0x30] sm:$0xff]
        %v2631 = vld [vmem:[#allocation3 + $0x38] sm:$0xff]
        %v2632 = vld [vmem:[%s2] sm:$0xf]
        %v2633 = vld [vmem:[%s2 + $0x4] sm:$0xf]
        %v2634 = vld [vmem:[%s2 + $0x8] sm:$0xf]
        %v2635 = vld [vmem:[%s2 + $0xc] sm:$0xf]
        %v2636 = vld [vmem:[%s2 + $0x10] sm:$0xf]
        %v2637 = vld [vmem:[%s2 + $0x14] sm:$0xf]
        %v2638 = vld [vmem:[%s2 + $0x18] sm:$0xf]
        %v2639 = vld [vmem:[%s2 + $0x1c] sm:$0xf]
        %v2640 = vld [vmem:[%s2 + $0x20] sm:$0xf]
        %v2641 = vld [vmem:[%s5] sm:$0x1]
        %v2643 = vlaneseq
        %v2644 = vshrl.u32 %v2643, 7
        %v2645 = vsub.s32 0, %v2644
        %v2646 = vrot.slane %v2641, %v2645
        %v2657 = vunpack.c.l.b16 %v2632
        %v2658 = vunpack.c.l.b16 %v2633
        %v2659 = vunpack.c.l.b16 %v2634
        %v2660 = vunpack.c.l.b16 %v2635
        %v2661 = vunpack.c.l.b16 %v2636
        %v2662 = vunpack.c.l.b16 %v2637
        %v2663 = vunpack.c.l.b16 %v2638
        %v2664 = vunpack.c.l.b16 %v2639
        %v2665 = vunpack.c.l.b16 %v2640
        %v2666 = vpack.c.b16 %v2658, %v2657
        %v2667 = vpack.c.b16 %v2660, %v2659
        %v2668 = vpack.c.b16 %v2662, %v2661
        %v2669 = vpack.c.b16 %v2664, %v2663
        %v2670 = vpack.c.b16 %v2665, %v2665
        %vm2675 = vcmask 588800
        %v2677 = vsel %vm2675, %v2624, 0
        %v2680 = vsel %vm2675, %v2625, 0
        %v2683 = vsel %vm2675, %v2626, 0
        %v2686 = vsel %vm2675, %v2627, 0
        %v2689 = vsel %vm2675, %v2628, 0
        %v2692 = vsel %vm2675, %v2629, 0
        %v2695 = vsel %vm2675, %v2630, 0
        %v2698 = vsel %vm2675, %v2631, 0
        %vm2700 = vcmask 1043456
        %v2702 = vsel %vm2700, %v2670, 0
        %2704 = vmatprep.subr.bf16.mxu0 0
        %2705 = vmatpush1.bf16.msra.mxu0 %v2666
        %2706 = vmatprep.subr.bf16.mxu0 0
        %2707 = vmatpush1.bf16.msra.mxu0 %v2667
        %2708 = vmatprep.subr.bf16.mxu0 0
        %2709 = vmatpush1.bf16.msra.mxu0 %v2668
        %2710 = vmatprep.subr.bf16.mxu0 0
        %2711 = vmatpush1.bf16.msra.mxu0 %v2669
        %2712 = vmatprep.subr.bf16.mxu0 0
        %2713 = vmatpush1.bf16.msra.mxu0 %v2702
        %2714 = vmatprep.subr.bf16.mxu0 0
        %2715 = vmatpush1.bf16.msra.mxu0 0
        %2716 = vmatprep.subr.bf16.mxu0 0
        %2717 = vmatpush1.bf16.msra.mxu0 0
        %2718 = vmatprep.subr.bf16.mxu0 0
        %2719 = vmatpush1.bf16.msra.mxu0 0
        %2720 = vmatprep.subr.bf16.mxu0 0
        %2721 = vmatpush1.bf16.msra.mxu0 0
        %2722 = vmatprep.subr.bf16.mxu0 0
        %2723 = vmatpush1.bf16.msra.mxu0 0
        %2724 = vmatprep.subr.bf16.mxu0 0
        %2725 = vmatpush1.bf16.msra.mxu0 0
        %2726 = vmatprep.subr.bf16.mxu0 0
        %2727 = vmatpush1.bf16.msra.mxu0 0
        %2728 = vmatprep.subr.bf16.mxu0 0
        %2729 = vmatpush1.bf16.msra.mxu0 0
        %2730 = vmatprep.subr.bf16.mxu0 0
        %2731 = vmatpush1.bf16.msra.mxu0 0
        %2732 = vmatprep.subr.bf16.mxu0 0
        %2733 = vmatpush1.bf16.msra.mxu0 0
        %2734 = vmatprep.subr.bf16.mxu0 0
        %2735 = vmatpush1.bf16.msra.mxu0 0
        %2736 = vmatprep.mubr.bf16.mxu0 0
        %2737 = vmatmul.mubr.bf16.gmra.mrb[0].mxu0 %v2677
        %v2738 = vpop.f32.mrb[0].mxu0
        %v2739 = vadd.f32 %v2646, %v2738
        %v2740 = vpop.f32.mrb[0].mxu0
        %v2741 = vpop.f32.mrb[0].mxu0
        %v2742 = vadd.f32 %v2646, %v2741
        %v2743 = vpop.f32.mrb[0].mxu0
        %2744 = vmatprep.mubr.bf16.mxu0 0
        %2745 = vmatmul.mubr.bf16.gmra.mrb[0].mxu0 %v2680
        %v2746 = vpop.f32.mrb[0].mxu0
        %v2747 = vadd.f32 %v2646, %v2746
        %v2748 = vpop.f32.mrb[0].mxu0
        %v2749 = vpop.f32.mrb[0].mxu0
        %v2750 = vadd.f32 %v2646, %v2749
        %v2751 = vpop.f32.mrb[0].mxu0
        %2752 = vmatprep.mubr.bf16.mxu0 0
        %2753 = vmatmul.mubr.bf16.gmra.mrb[0].mxu0 %v2683
        %v2754 = vpop.f32.mrb[0].mxu0
        %v2755 = vadd.f32 %v2646, %v2754
        %v2756 = vpop.f32.mrb[0].mxu0
        %v2757 = vpop.f32.mrb[0].mxu0
        %v2758 = vadd.f32 %v2646, %v2757
        %v2759 = vpop.f32.mrb[0].mxu0
        %2760 = vmatprep.mubr.bf16.mxu0 0
        %2761 = vmatmul.mubr.bf16.gmra.mrb[0].mxu0 %v2686
        %v2762 = vpop.f32.mrb[0].mxu0
        %v2763 = vadd.f32 %v2646, %v2762
        %v2764 = vpop.f32.mrb[0].mxu0
        %v2765 = vpop.f32.mrb[0].mxu0
        %v2766 = vadd.f32 %v2646, %v2765
        %v2767 = vpop.f32.mrb[0].mxu0
        %2768 = vmatprep.mubr.bf16.mxu0 0
        %2769 = vmatmul.mubr.bf16.gmra.mrb[0].mxu0 %v2689
        %v2770 = vpop.f32.mrb[0].mxu0
        %v2771 = vadd.f32 %v2646, %v2770
        %v2772 = vpop.f32.mrb[0].mxu0
        %v2773 = vpop.f32.mrb[0].mxu0
        %v2774 = vadd.f32 %v2646, %v2773
        %v2775 = vpop.f32.mrb[0].mxu0
        %2776 = vmatprep.mubr.bf16.mxu0 0
        %2777 = vmatmul.mubr.bf16.gmra.mrb[0].mxu0 %v2692
        %v2778 = vpop.f32.mrb[0].mxu0
        %v2779 = vadd.f32 %v2646, %v2778
        %v2780 = vpop.f32.mrb[0].mxu0
        %v2781 = vpop.f32.mrb[0].mxu0
        %v2782 = vadd.f32 %v2646, %v2781
        %v2783 = vpop.f32.mrb[0].mxu0
        %2784 = vmatprep.mubr.bf16.mxu0 0
        %2785 = vmatmul.mubr.bf16.gmra.mrb[0].mxu0 %v2695
        %v2786 = vpop.f32.mrb[0].mxu0
        %v2787 = vadd.f32 %v2646, %v2786
        %v2788 = vpop.f32.mrb[0].mxu0
        %v2789 = vpop.f32.mrb[0].mxu0
        %v2790 = vadd.f32 %v2646, %v2789
        %v2791 = vpop.f32.mrb[0].mxu0
        %2792 = vmatprep.mubr.bf16.mxu0 0
        %2793 = vmatmul.mubr.bf16.gmra.mrb[0].mxu0 %v2698
        %v2794 = vpop.f32.mrb[0].mxu0
        %v2795 = vadd.f32 %v2646, %v2794
        %v2796 = vpop.f32.mrb[0].mxu0
        %v2797 = vpop.f32.mrb[0].mxu0
        %v2798 = vadd.f32 %v2646, %v2797
        %v2799 = vpop.f32.mrb[0].mxu0
        %2800 = vdwg.mxu0
        %v2801 = vmax.f32 %v2739, 0.0
        %v2802 = vmax.f32 %v2742, 0.0
        %v2803 = vmax.f32 %v2747, 0.0
        %v2804 = vmax.f32 %v2750, 0.0
        %v2805 = vmax.f32 %v2755, 0.0
        %v2806 = vmax.f32 %v2758, 0.0
        %v2807 = vmax.f32 %v2763, 0.0
        %v2808 = vmax.f32 %v2766, 0.0
        %v2809 = vmax.f32 %v2771, 0.0
        %v2810 = vmax.f32 %v2774, 0.0
        %v2811 = vmax.f32 %v2779, 0.0
        %v2812 = vmax.f32 %v2782, 0.0
        %v2813 = vmax.f32 %v2787, 0.0
        %v2814 = vmax.f32 %v2790, 0.0
        %v2815 = vmax.f32 %v2795, 0.0
        %v2816 = vmax.f32 %v2798, 0.0
        %v2817 = vpack.c.bf16 %v2802, %v2801
        %v2818 = vpack.c.bf16 %v2804, %v2803
        %v2819 = vpack.c.bf16 %v2806, %v2805
        %v2820 = vpack.c.bf16 %v2808, %v2807
        %v2821 = vpack.c.bf16 %v2810, %v2809
        %v2822 = vpack.c.bf16 %v2812, %v2811
        %v2823 = vpack.c.bf16 %v2814, %v2813
        %v2824 = vpack.c.bf16 %v2816, %v2815
        %v2825 = vld [vmem:[%s3] sm:$0xf]
        %v2826 = vld [vmem:[%s6] sm:$0x1]
        %v2828 = vlaneseq
        %v2829 = vshrl.u32 %v2828, 7
        %v2830 = vsub.s32 0, %v2829
        %v2831 = vrot.slane %v2826, %v2830
        %v2834 = vsel %vm1128, %v2817, 0
        %v2837 = vsel %vm1128, %v2818, 0
        %v2840 = vsel %vm1128, %v2819, 0
        %v2843 = vsel %vm1128, %v2820, 0
        %v2846 = vsel %vm1128, %v2821, 0
        %v2849 = vsel %vm1128, %v2822, 0
        %v2852 = vsel %vm1128, %v2823, 0
        %v2855 = vsel %vm1128, %v2824, 0
        %v2858 = vsel %vm2700, %v2825, 0
        %2860 = vmatprep.subr.bf16.mxu0 0
        %2861 = vmatpush1.bf16.msra.mxu0 %v2858
        %2862 = vmatprep.subr.bf16.mxu0 0
        %2863 = vmatpush1.bf16.msra.mxu0 0
        %2864 = vmatprep.subr.bf16.mxu0 0
        %2865 = vmatpush1.bf16.msra.mxu0 0
        %2866 = vmatprep.subr.bf16.mxu0 0
        %2867 = vmatpush1.bf16.msra.mxu0 0
        %2868 = vmatprep.subr.bf16.mxu0 0
        %2869 = vmatpush1.bf16.msra.mxu0 0
        %2870 = vmatprep.subr.bf16.mxu0 0
        %2871 = vmatpush1.bf16.msra.mxu0 0
        %2872 = vmatprep.subr.bf16.mxu0 0
        %2873 = vmatpush1.bf16.msra.mxu0 0
        %2874 = vmatprep.subr.bf16.mxu0 0
        %2875 = vmatpush1.bf16.msra.mxu0 0
        %2876 = vmatprep.subr.bf16.mxu0 0
        %2877 = vmatpush1.bf16.msra.mxu0 0
        %2878 = vmatprep.subr.bf16.mxu0 0
        %2879 = vmatpush1.bf16.msra.mxu0 0
        %2880 = vmatprep.subr.bf16.mxu0 0
        %2881 = vmatpush1.bf16.msra.mxu0 0
        %2882 = vmatprep.subr.bf16.mxu0 0
        %2883 = vmatpush1.bf16.msra.mxu0 0
        %2884 = vmatprep.subr.bf16.mxu0 0
        %2885 = vmatpush1.bf16.msra.mxu0 0
        %2886 = vmatprep.subr.bf16.mxu0 0
        %2887 = vmatpush1.bf16.msra.mxu0 0
        %2888 = vmatprep.subr.bf16.mxu0 0
        %2889 = vmatpush1.bf16.msra.mxu0 0
        %2890 = vmatprep.subr.bf16.mxu0 0
        %2891 = vmatpush1.bf16.msra.mxu0 0
        %2892 = vmatprep.mubr.bf16.mxu0 0
        %2893 = vmatmul.mubr.bf16.gmra.mrb[0].mxu0 %v2834
        %v2894 = vpop.f32.mrb[0].mxu0
        %v2895 = vadd.f32 %v2831, %v2894
        %v2896 = vpop.f32.mrb[0].mxu0
        %v2897 = vpop.f32.mrb[0].mxu0
        %v2898 = vadd.f32 %v2831, %v2897
        %v2899 = vpop.f32.mrb[0].mxu0
        %2900 = vmatprep.mubr.bf16.mxu0 0
        %2901 = vmatmul.mubr.bf16.gmra.mrb[0].mxu0 %v2837
        %v2902 = vpop.f32.mrb[0].mxu0
        %v2903 = vadd.f32 %v2831, %v2902
        %v2904 = vpop.f32.mrb[0].mxu0
        %v2905 = vpop.f32.mrb[0].mxu0
        %v2906 = vadd.f32 %v2831, %v2905
        %v2907 = vpop.f32.mrb[0].mxu0
        %2908 = vmatprep.mubr.bf16.mxu0 0
        %2909 = vmatmul.mubr.bf16.gmra.mrb[0].mxu0 %v2840
        %v2910 = vpop.f32.mrb[0].mxu0
        %v2911 = vadd.f32 %v2831, %v2910
        %v2912 = vpop.f32.mrb[0].mxu0
        %v2913 = vpop.f32.mrb[0].mxu0
        %v2914 = vadd.f32 %v2831, %v2913
        %v2915 = vpop.f32.mrb[0].mxu0
        %2916 = vmatprep.mubr.bf16.mxu0 0
        %2917 = vmatmul.mubr.bf16.gmra.mrb[0].mxu0 %v2843
        %v2918 = vpop.f32.mrb[0].mxu0
        %v2919 = vadd.f32 %v2831, %v2918
        %v2920 = vpop.f32.mrb[0].mxu0
        %v2921 = vpop.f32.mrb[0].mxu0
        %v2922 = vadd.f32 %v2831, %v2921
        %v2923 = vpop.f32.mrb[0].mxu0
        %2924 = vmatprep.mubr.bf16.mxu0 0
        %2925 = vmatmul.mubr.bf16.gmra.mrb[0].mxu0 %v2846
        %v2926 = vpop.f32.mrb[0].mxu0
        %v2927 = vadd.f32 %v2831, %v2926
        %v2928 = vpop.f32.mrb[0].mxu0
        %v2929 = vpop.f32.mrb[0].mxu0
        %v2930 = vadd.f32 %v2831, %v2929
        %v2931 = vpop.f32.mrb[0].mxu0
        %2932 = vmatprep.mubr.bf16.mxu0 0
        %2933 = vmatmul.mubr.bf16.gmra.mrb[0].mxu0 %v2849
        %v2934 = vpop.f32.mrb[0].mxu0
        %v2935 = vadd.f32 %v2831, %v2934
        %v2936 = vpop.f32.mrb[0].mxu0
        %v2937 = vpop.f32.mrb[0].mxu0
        %v2938 = vadd.f32 %v2831, %v2937
        %v2939 = vpop.f32.mrb[0].mxu0
        %2940 = vmatprep.mubr.bf16.mxu0 0
        %2941 = vmatmul.mubr.bf16.gmra.mrb[0].mxu0 %v2852
        %v2942 = vpop.f32.mrb[0].mxu0
        %v2943 = vadd.f32 %v2831, %v2942
        %v2944 = vpop.f32.mrb[0].mxu0
        %v2945 = vpop.f32.mrb[0].mxu0
        %v2946 = vadd.f32 %v2831, %v2945
        %v2947 = vpop.f32.mrb[0].mxu0
        %2948 = vmatprep.mubr.bf16.mxu0 0
        %2949 = vmatmul.mubr.bf16.gmra.mrb[0].mxu0 %v2855
        %v2950 = vpop.f32.mrb[0].mxu0
        %v2951 = vadd.f32 %v2831, %v2950
        %v2952 = vpop.f32.mrb[0].mxu0
        %v2953 = vpop.f32.mrb[0].mxu0
        %v2954 = vadd.f32 %v2831, %v2953
        %v2955 = vpop.f32.mrb[0].mxu0
        %2956 = vdwg.mxu0
        %v2957 = vld [vmem:[%s321] sm:$0xf]
        %v2958 = vld [vmem:[%s321 + $0x4] sm:$0xf]
        %v2959 = vld [vmem:[%s321 + $0x8] sm:$0xf]
        %v2960 = vld [vmem:[%s321 + $0xc] sm:$0xf]
        %v2961 = vld [vmem:[%s321 + $0x10] sm:$0xf]
        %v2962 = vld [vmem:[%s321 + $0x14] sm:$0xf]
        %v2963 = vld [vmem:[%s321 + $0x18] sm:$0xf]
        %v2964 = vld [vmem:[%s321 + $0x1c] sm:$0xf]
        %v2965 = vld [vmem:[%s321 + $0x20] sm:$0xf]
        %v2966 = vld [vmem:[%s321 + $0x24] sm:$0xf]
        %v2967 = vld [vmem:[%s321 + $0x28] sm:$0xf]
        %v2968 = vld [vmem:[%s321 + $0x2c] sm:$0xf]
        %v2969 = vld [vmem:[%s321 + $0x30] sm:$0xf]
        %v2970 = vld [vmem:[%s321 + $0x34] sm:$0xf]
        %v2971 = vld [vmem:[%s321 + $0x38] sm:$0xf]
        %v2972 = vld [vmem:[%s321 + $0x3c] sm:$0xf]
        %v2973 = vunpack.c.l.bf16 %v2957
        %v2974 = vunpack.c.l.bf16 %v2958
        %v2975 = vunpack.c.l.bf16 %v2959
        %v2976 = vunpack.c.l.bf16 %v2960
        %v2977 = vunpack.c.l.bf16 %v2961
        %v2978 = vunpack.c.l.bf16 %v2962
        %v2979 = vunpack.c.l.bf16 %v2963
        %v2980 = vunpack.c.l.bf16 %v2964
        %v2981 = vunpack.c.l.bf16 %v2965
        %v2982 = vunpack.c.l.bf16 %v2966
        %v2983 = vunpack.c.l.bf16 %v2967
        %v2984 = vunpack.c.l.bf16 %v2968
        %v2985 = vunpack.c.l.bf16 %v2969
        %v2986 = vunpack.c.l.bf16 %v2970
        %v2987 = vunpack.c.l.bf16 %v2971
        %v2988 = vunpack.c.l.bf16 %v2972
        %v2989 = vadd.f32 %v2895, %v2973
        %v2990 = vadd.f32 %v2898, %v2974
        %v2991 = vadd.f32 %v2903, %v2975
        %v2992 = vadd.f32 %v2906, %v2976
        %v2993 = vadd.f32 %v2911, %v2977
        %v2994 = vadd.f32 %v2914, %v2978
        %v2995 = vadd.f32 %v2919, %v2979
        %v2996 = vadd.f32 %v2922, %v2980
        %v2997 = vadd.f32 %v2927, %v2981
        %v2998 = vadd.f32 %v2930, %v2982
        %v2999 = vadd.f32 %v2935, %v2983
        %v3000 = vadd.f32 %v2938, %v2984
        %v3001 = vadd.f32 %v2943, %v2985
        %v3002 = vadd.f32 %v2946, %v2986
        %v3003 = vadd.f32 %v2951, %v2987
        %v3004 = vadd.f32 %v2954, %v2988
        %v3005 = vmax.f32 %v2989, 0.0
        %v3006 = vmax.f32 %v2990, 0.0
        %v3007 = vmax.f32 %v2991, 0.0
        %v3008 = vmax.f32 %v2992, 0.0
        %v3009 = vmax.f32 %v2993, 0.0
        %v3010 = vmax.f32 %v2994, 0.0
        %v3011 = vmax.f32 %v2995, 0.0
        %v3012 = vmax.f32 %v2996, 0.0
        %v3013 = vmax.f32 %v2997, 0.0
        %v3014 = vmax.f32 %v2998, 0.0
        %v3015 = vmax.f32 %v2999, 0.0
        %v3016 = vmax.f32 %v3000, 0.0
        %v3017 = vmax.f32 %v3001, 0.0
        %v3018 = vmax.f32 %v3002, 0.0
        %v3019 = vmax.f32 %v3003, 0.0
        %v3020 = vmax.f32 %v3004, 0.0
        %v3021 = vpack.c.bf16 %v3006, %v3005
        %v3022 = vpack.c.bf16 %v3008, %v3007
        %v3023 = vpack.c.bf16 %v3010, %v3009
        %v3024 = vpack.c.bf16 %v3012, %v3011
        %v3025 = vpack.c.bf16 %v3014, %v3013
        %v3026 = vpack.c.bf16 %v3016, %v3015
        %v3027 = vpack.c.bf16 %v3018, %v3017
        %v3028 = vpack.c.bf16 %v3020, %v3019
        %v3037 = vunpack.c.l.b16 %v3021
        %v3038 = vunpack.c.h.b16 %v3021
        %v3039 = vunpack.c.l.b16 %v3022
        %v3040 = vunpack.c.h.b16 %v3022
        %v3041 = vunpack.c.l.b16 %v3023
        %v3042 = vunpack.c.h.b16 %v3023
        %v3043 = vunpack.c.l.b16 %v3024
        %v3044 = vunpack.c.h.b16 %v3024
        %v3045 = vunpack.c.l.b16 %v3025
        %v3046 = vunpack.c.h.b16 %v3025
        %v3047 = vunpack.c.l.b16 %v3026
        %v3048 = vunpack.c.h.b16 %v3026
        %v3049 = vunpack.c.l.b16 %v3027
        %v3050 = vunpack.c.h.b16 %v3027
        %v3051 = vunpack.c.l.b16 %v3028
        %v3052 = vunpack.c.h.b16 %v3028
        %v3053 = vpack.c.b16 %v3037, %v3037
        %v3054 = vpack.c.b16 %v3038, %v3038
        %v3055 = vpack.c.b16 %v3039, %v3039
        %v3056 = vpack.c.b16 %v3040, %v3040
        %v3057 = vpack.c.b16 %v3041, %v3041
        %v3058 = vpack.c.b16 %v3042, %v3042
        %v3059 = vpack.c.b16 %v3043, %v3043
        %v3060 = vpack.c.b16 %v3044, %v3044
        %v3061 = vpack.c.b16 %v3045, %v3045
        %v3062 = vpack.c.b16 %v3046, %v3046
        %v3063 = vpack.c.b16 %v3047, %v3047
        %v3064 = vpack.c.b16 %v3048, %v3048
        %v3065 = vpack.c.b16 %v3049, %v3049
        %v3066 = vpack.c.b16 %v3050, %v3050
        %v3067 = vpack.c.b16 %v3051, %v3051
        %v3068 = vpack.c.b16 %v3052, %v3052
        %vm3085 = vcmask 257024
        %3086 = vst.msk [vmem:[%s310] sm:$0xf] %vm3085, %v3053
        %3087 = vst.msk [vmem:[%s310 + $0x4] sm:$0xf] %vm3085, %v3054
        %3088 = vst.msk [vmem:[%s310 + $0x8] sm:$0xf] %vm3085, %v3055
        %3089 = vst.msk [vmem:[%s310 + $0xc] sm:$0xf] %vm3085, %v3056
        %3090 = vst.msk [vmem:[%s310 + $0x10] sm:$0xf] %vm3085, %v3057
        %3091 = vst.msk [vmem:[%s310 + $0x14] sm:$0xf] %vm3085, %v3058
        %3092 = vst.msk [vmem:[%s310 + $0x18] sm:$0xf] %vm3085, %v3059
        %3093 = vst.msk [vmem:[%s310 + $0x1c] sm:$0xf] %vm3085, %v3060
        %3094 = vst.msk [vmem:[%s310 + $0x20] sm:$0xf] %vm3085, %v3061
        %3095 = vst.msk [vmem:[%s310 + $0x24] sm:$0xf] %vm3085, %v3062
        %3096 = vst.msk [vmem:[%s310 + $0x28] sm:$0xf] %vm3085, %v3063
        %3097 = vst.msk [vmem:[%s310 + $0x2c] sm:$0xf] %vm3085, %v3064
        %3098 = vst.msk [vmem:[%s310 + $0x30] sm:$0xf] %vm3085, %v3065
        %3099 = vst.msk [vmem:[%s310 + $0x34] sm:$0xf] %vm3085, %v3066
        %3100 = vst.msk [vmem:[%s310 + $0x38] sm:$0xf] %vm3085, %v3067
        %3101 = vst.msk [vmem:[%s310 + $0x3c] sm:$0xf] %vm3085, %v3068
        %s3102 = sand.u32 %s198, 1
        %s3103 = scalar_lea.sflag [#allocation6], %s3102
        %s3104 = sand.u32 %s198, 1
        %s3105 = smul.addr %s3104, 64
        %s3106 = scalar_lea.vmem [#allocation7], %s3105
        // Predicated region
        $region53: #{tpu_custom_call.1} parent=47 // pred_check
          %p3107 = pneg %p208
        $region54: #{tpu_custom_call.1} parent=47 // pred_check_branch
          %3109 = sbr.rel (%p3107) target = $region56
        $region55: #{tpu_custom_call.1} parent=47 // pred_region
          %s3110 = smul.u32 8, %s29
          %s3112 = ssub.s32 1024, 1024
          %3113 = vsyncadd %s3103, %s3112
          %s3114 = smul.addr %s3110, 2
          %s3115 = smul.addr %s28, 32
          %s3116 = sadd.s32 %s3114, %s3115
          %s3117 = smul.addr %s3116, 64
          %s3118 = scalar_lea.hbm %s7, %s3117
          %s3119 = sshll.u32 %s3106, 4
          %s3120 = int_to_ptr.vmem [resolvable:$true] %s3119
          %3125 = dma.vmem_to_hbm [thread:$0]  %s3120, 1024, %s3118, %s3103, 64, 64, 4
        $region56: #{tpu_custom_call.1} parent=47 // pred_fallthru
          _
      $region48: #{tpu_custom_call.1} parent=5 // pred_fallthru
        _
      %p3126 = scmp.le.s32.totalorder 2, %s19
      // Predicated region
      $region57: #{tpu_custom_call.1} parent=5 // pred_check
        %p3127 = pneg %p3126
      $region58: #{tpu_custom_call.1} parent=5 // pred_check_branch
        %3129 = sbr.rel (%p3127) target = $region60
      $region59: #{tpu_custom_call.1} parent=5 // pred_region
        %s3130 = ssub.s32 %s19, 2
        // Predicated region
        $region61: #{tpu_custom_call.1} parent=59 // pred_check
          %p3131 = pneg %p214
        $region62: #{tpu_custom_call.1} parent=59 // pred_check_branch
          %3133 = sbr.rel (%p3131) target = $region64
        $region63: #{tpu_custom_call.1} parent=59 // pred_region
          %s3134 = sand.u32 %s199, 1
          %s3135 = scalar_lea.sflag [#allocation6], %s3134
          %s3136 = sand.u32 %s199, 1
          %s3137 = smul.addr %s3136, 64
          %s3138 = scalar_lea.vmem [#allocation7], %s3137
          %3139 = dma.done %s3135, 1024
        $region64: #{tpu_custom_call.1} parent=59 // pred_fallthru
          _
      $region60: #{tpu_custom_call.1} parent=5 // pred_fallthru
        _
    $region6: #{tpu_custom_call.1} parent=1 // loop_footer
      %s23 = sadd.s32 1, %s19
    $region7: #{tpu_custom_call.1} parent=1 // loop_footer_branch
      %18 = sbr.rel target = $region3
    $region8: #{tpu_custom_call.1} parent=1 // loop_exit
      _
    %3140 = vsyncpa [#allocation5], 1
    %s3141 = scalar_lea.sflag [#allocation5], 1
    %3142 = vsyncpa %s3141, 1
    %3143 = vsyncpa [#allocation6], 1
    %s3144 = scalar_lea.sflag [#allocation6], 1
    %3145 = vsyncpa %s3144, 1

</llo_original>
